<compile_context>
chip_gen: v5e
topology: v5e:2x2
jax: 0.10.0
libtpu: 0.0.40
codegen_flags: <defaults>
</compile_context>

<pallas_src>
import jax
import jax.numpy as jnp
from jax import lax
from jax.experimental import pallas as pl
from jax.experimental.pallas import tpu as pltpu

# ---------------------------------------------------------------------------
# Problem sizes (small, consistent with the module's forward semantics)
# ---------------------------------------------------------------------------
B, C, H, W = 2, 4, 16, 16            # input images [B, C, H, W] (NCHW)
HW = H * W
FEAT_DIMS = (1536, 2240, 1024, 3712) # b3, 12GF, vovnet, 32GF  (sum = 8512)
K_FEAT = sum(FEAT_DIMS)              # 8512
NB_CLASS = 4

# TPU-friendly padded size on the concatenated-feature (lane) axis only.
K_PAD = ((K_FEAT + 127) // 128) * 128          # 8576


# ---------------------------------------------------------------------------
# Pallas kernel: pool + backbone-projection/concat + ReLU + classifier, fused
# ---------------------------------------------------------------------------
def jstnet_kernel(x_ref, wcat_ref, bcat_ref, wclsT_ref, bcls_ref, o_ref):
    # x_ref     : [B, C, HW]          f32   images, spatial flattened on lanes
    # wcat_ref  : [C, K_PAD]          bf16  column-concatenated projection weights
    # bcat_ref  : [1, K_PAD]          f32   concatenated projection biases
    # wclsT_ref : [NB_CLASS, K_PAD]   bf16  classifier weight, transposed + compact
    # bcls_ref  : [1, NB_CLASS]       f32   classifier bias
    # o_ref     : [B, NB_CLASS]       f32   logits (already sliced -- no padding)

    # Global average pool over H*W: lane reduction (XLU), stays in f32.
    pooled = jnp.sum(x_ref[...], axis=-1) * (1.0 / float(HW))        # [B, C] f32

    # "concat of the four backbone outputs": one matmul against the
    # column-concatenated projection weights.  K=C=4, so keeping the f32
    # pooled operand costs nothing; accumulate in f32.
    feats = jnp.dot(pooled, wcat_ref[...].astype(jnp.float32),
                    preferred_element_type=jnp.float32) + bcat_ref[...]  # [B, K_PAD]

    # x = self.classifier(F.relu(new_input)) -- ReLU/bias in f32 (v5e has no
    # bf16 VPU); only the big-K MXU contraction runs in bf16.
    feats = jnp.maximum(feats, 0.0)

    # trans_b matmul: [B, K_PAD] x [NB_CLASS, K_PAD]^T -> [B, NB_CLASS].
    logits = lax.dot_general(
        feats.astype(jnp.bfloat16), wclsT_ref[...],
        dimension_numbers=(((1,), (1,)), ((), ())),
        preferred_element_type=jnp.float32)
    o_ref[...] = logits + bcls_ref[...]


def jstnet_head(x3, wcat, bcat, wclsT, bcls):
    """x3: [B, C, HW] f32.  Returns logits [B, NB_CLASS] f32 (no padding)."""
    flops = B * C * HW + 2 * B * C * K_PAD + 2 * B * K_PAD * NB_CLASS
    bytes_accessed = int(
        sum(a.size * a.dtype.itemsize for a in (x3, wcat, bcat, wclsT, bcls))
        + B * NB_CLASS * 4)
    return pl.pallas_call(
        jstnet_kernel,
        out_shape=jax.ShapeDtypeStruct((B, NB_CLASS), jnp.float32),
        in_specs=[
            pl.BlockSpec(x3.shape, lambda: (0, 0, 0)),
            pl.BlockSpec(wcat.shape, lambda: (0, 0)),
            pl.BlockSpec(bcat.shape, lambda: (0, 0)),
            pl.BlockSpec(wclsT.shape, lambda: (0, 0)),
            pl.BlockSpec(bcls.shape, lambda: (0, 0)),
        ],
        out_specs=pl.BlockSpec((B, NB_CLASS), lambda: (0, 0)),
        cost_estimate=pl.CostEstimate(flops=flops, transcendentals=0,
                                      bytes_accessed=bytes_accessed),
        compiler_params=pltpu.CompilerParams(vmem_limit_bytes=16 << 20),
    )(x3, wcat, bcat, wclsT, bcls)


# ---------------------------------------------------------------------------
# Parameter construction (deterministic, in-script)
# ---------------------------------------------------------------------------
def make_params(key):
    kproj, kpb, kcls, kcb = jax.random.split(key, 4)

    # Synthetic backbone stubs: global-avg-pool(C) -> Linear(C, feat_i).
    # TODO(synk): the real efficientnet-b3 / regnet-12GF / regnet-32GF / vovnet
    # backbones are external nn.Modules passed into JSTNET.__init__ with no
    # definition in this file; they are replaced by linear stubs here.
    w_proj = 0.05 * jax.random.normal(kproj, (C, K_FEAT), jnp.float32)
    b_proj = 0.05 * jax.random.normal(kpb, (K_FEAT,), jnp.float32)

    # self.classifier = nn.Linear(8512, nb_class)
    w_cls = 0.02 * jax.random.normal(kcls, (K_FEAT, NB_CLASS), jnp.float32)
    b_cls = 0.02 * jax.random.normal(kcb, (NB_CLASS,), jnp.float32)

    # --- TPU layouts: bf16 weights, lane-padded K axis only.
    # Zero padding on the K axis is exact: zero weight cols give zero feats,
    # relu(0)=0, and the padded wclsT cols are zero too.
    wcat = (jnp.zeros((C, K_PAD), jnp.bfloat16)
            .at[:, :K_FEAT].set(w_proj.astype(jnp.bfloat16)))
    bcat = jnp.zeros((1, K_PAD), jnp.float32).at[0, :K_FEAT].set(b_proj)
    wclsT = (jnp.zeros((NB_CLASS, K_PAD), jnp.bfloat16)
             .at[:, :K_FEAT].set(w_cls.T.astype(jnp.bfloat16)))
    bcls = b_cls.reshape(1, NB_CLASS)
    return (w_proj, b_proj, w_cls, b_cls), (wcat, bcat, wclsT, bcls)


# ---------------------------------------------------------------------------
# Full forward: one contiguous reshape + one fused Pallas call
# ---------------------------------------------------------------------------
@jax.jit
def jstnet_forward(x_nchw, wcat, bcat, wclsT, bcls):
    x3 = x_nchw.reshape(B, C, H * W)          # contiguous view, no data movement
    return jstnet_head(x3, wcat, bcat, wclsT, bcls)   # [B, NB_CLASS]


def jstnet_forward_ref(x_nchw, w_proj, b_proj, w_cls, b_cls):
    """Pure-JAX f32 reference of the same semantics (for correctness check)."""
    pooled = jnp.mean(x_nchw, axis=(2, 3))                           # [B, C]
    feats = pooled @ w_proj + b_proj                                 # concat of 4 backbones
    return jnp.maximum(feats, 0.0) @ w_cls + b_cls                   # Linear(relu(cat))


if __name__ == "__main__":
    key = jax.random.PRNGKey(0)
    kx, kp = jax.random.split(key)

    x = jax.random.normal(kx, (B, C, H, W), jnp.float32)             # NCHW input
    (w_proj, b_proj, w_cls, b_cls), (wcat, bcat, wclsT, bcls) = make_params(kp)

    out = jax.block_until_ready(jstnet_forward(x, wcat, bcat, wclsT, bcls))

    ref = jstnet_forward_ref(x, w_proj, b_proj, w_cls, b_cls)
    assert out.shape == (B, NB_CLASS)
    # tolerance covers bf16 weight / classifier-contraction quantization
    assert jnp.allclose(out, ref, atol=1e-2, rtol=1e-2), (out, ref)

    print("KERNEL_OK")
</pallas_src>

<mosaic_0001>
module attributes {stable_mosaic.version = 11 : i64} {
  func.func @jstnet_kernel(%arg0: memref<2x4x256xf32, #tpu.memory_space<vmem>>, %arg1: memref<4x8576xbf16, #tpu.memory_space<vmem>>, %arg2: memref<1x8576xf32, #tpu.memory_space<vmem>>, %arg3: memref<4x8576xbf16, #tpu.memory_space<vmem>>, %arg4: memref<1x4xf32, #tpu.memory_space<vmem>>, %arg5: memref<2x4xf32, #tpu.memory_space<vmem>>) attributes {dimension_semantics = [], scalar_prefetch = 0 : i64, scratch_operands = 0 : i64, tpu.core_type = #tpu.core_type<tc>} {
    %c0 = arith.constant 0 : index
    %c0_0 = arith.constant 0 : index
    %c0_1 = arith.constant 0 : index
    %0 = vector.load %arg0[%c0, %c0_0, %c0_1] : memref<2x4x256xf32, #tpu.memory_space<vmem>>, vector<2x4x256xf32>
    %cst = arith.constant dense<0.000000e+00> : vector<2x4xf32>
    %1 = vector.multi_reduction <add>, %0, %cst [2] : vector<2x4x256xf32> to vector<2x4xf32>
    %cst_2 = arith.constant 3.906250e-03 : f32
    %2 = vector.broadcast %cst_2 : f32 to vector<2x4xf32>
    %3 = arith.mulf %1, %2 : vector<2x4xf32>
    %c0_3 = arith.constant 0 : index
    %c0_4 = arith.constant 0 : index
    %4 = vector.load %arg1[%c0_3, %c0_4] : memref<4x8576xbf16, #tpu.memory_space<vmem>>, vector<4x8576xbf16>
    %5 = arith.extf %4 : vector<4x8576xbf16> to vector<4x8576xf32>
    %cst_5 = arith.constant dense<0.000000e+00> : vector<2x8576xf32>
    %6 = tpu.matmul %3, %5, %cst_5 {dimension_numbers = #tpu.dot_dimension_numbers<[1], [0], [0], [1], [0, 0, 1, 1], [], []>} : vector<2x4xf32>, vector<4x8576xf32>, vector<2x8576xf32> -> vector<2x8576xf32>
    %c0_6 = arith.constant 0 : index
    %c0_7 = arith.constant 0 : index
    %7 = vector.load %arg2[%c0_6, %c0_7] : memref<1x8576xf32, #tpu.memory_space<vmem>>, vector<1x8576xf32>
    %8 = vector.broadcast %7 : vector<1x8576xf32> to vector<2x8576xf32>
    %9 = arith.addf %6, %8 : vector<2x8576xf32>
    %cst_8 = arith.constant 0.000000e+00 : f32
    %10 = vector.broadcast %cst_8 : f32 to vector<2x8576xf32>
    %11 = arith.maximumf %9, %10 : vector<2x8576xf32>
    %12 = arith.truncf %11 : vector<2x8576xf32> to vector<2x8576xbf16>
    %c0_9 = arith.constant 0 : index
    %c0_10 = arith.constant 0 : index
    %13 = vector.load %arg3[%c0_9, %c0_10] : memref<4x8576xbf16, #tpu.memory_space<vmem>>, vector<4x8576xbf16>
    %cst_11 = arith.constant dense<0.000000e+00> : vector<2x4xf32>
    %14 = tpu.matmul %12, %13, %cst_11 {dimension_numbers = #tpu.dot_dimension_numbers<[1], [1], [0], [0], [0, 0, 1, 0], [], []>} : vector<2x8576xbf16>, vector<4x8576xbf16>, vector<2x4xf32> -> vector<2x4xf32>
    %c0_12 = arith.constant 0 : index
    %c0_13 = arith.constant 0 : index
    %15 = vector.load %arg4[%c0_12, %c0_13] : memref<1x4xf32, #tpu.memory_space<vmem>>, vector<1x4xf32>
    %16 = vector.broadcast %15 : vector<1x4xf32> to vector<2x4xf32>
    %17 = arith.addf %14, %16 : vector<2x4xf32>
    %c0_14 = arith.constant 0 : index
    %c0_15 = arith.constant 0 : index
    %18 = vector.load %arg5[%c0_14, %c0_15] : memref<2x4xf32, #tpu.memory_space<vmem>>, vector<2x4xf32>
    tpu.vector_store %arg5[%c0_14, %c0_15], %17 {strides = array<i32>} : memref<2x4xf32, #tpu.memory_space<vmem>>, vector<2x4xf32>,
    return
  }
}

</mosaic_0001>

<llo_original>
// kernel: jstnet_forward.1
$region0: #{jstnet_forward.1}
  #allocation0 [shape = 'u32[]', space=smem, size = 0x4, offset = 0x4, fixed_abs, tag = 'smem constant byte address 0x4 - core index']
  #allocation1 [shape = 'u32[72,128]{1,0:T(1,128)}', space=vmem, size = 0x9000, scoped, tag = 'internal scratch']
  %s0 = inlined_call_operand.vmem [shape: f32[2,4,256], index: 0, kind: input, shape index: {}]
  %s1 = inlined_call_operand.vmem [shape: bf16[4,8576], index: 1, kind: input, shape index: {}]
  %s2 = inlined_call_operand.hbm [shape: f32[1,8576], index: 2, kind: input, shape index: {}]
  %s3 = inlined_call_operand.hbm [shape: bf16[4,8576], index: 3, kind: input, shape index: {}]
  %s4 = inlined_call_operand.vmem [shape: f32[1,4], index: 4, kind: input, shape index: {}]
  %s5 = inlined_call_operand.hbm [shape: f32[2,4], index: 5, kind: output, shape index: {}]
  %s6 = sld [smem:[#allocation0]]
  $region38: #{jstnet_forward.1} parent=0
    _
  %s8 = ssub.s32 1, %s6
  %s9 = scalar_select 0, %s8, %s6
  $region1: #{jstnet_forward.1} parent=0
    #allocation2 [shape = 'u8[34304]{0}', space=vmem, size = 0x8800, scoped, tag = 'input window, operand 2, single buffered']
    #allocation3 [shape = 's32[1]{0}', space=sflag, size = 0x4, scoped, tag = 'scoped memory for jstnet_forward.1']
    #allocation4 [shape = 's32[1]{0}', space=sflag, size = 0x4, scoped, tag = 'scoped memory for jstnet_forward.1']
    #allocation5 [shape = 'u8[68608]{0}', space=vmem, size = 0x10c00, scoped, tag = 'input window, operand 3, single buffered']
    #allocation6 [shape = 's32[1]{0}', space=sflag, size = 0x4, scoped, tag = 'scoped memory for jstnet_forward.1']
    #allocation7 [shape = 'u8[1024]{0}', space=vmem, size = 0x400, scoped, tag = 'output window, operand 0, single buffered']
    %10 = vsyncpa [#allocation3], 0
    %11 = vsyncpa [#allocation6], 0
    %12 = vsyncpa [#allocation4], 0
    // Predicated region
    $region2: #{jstnet_forward.1} parent=1 // pred_check
      _
    $region3: #{jstnet_forward.1} parent=1 // pred_check_branch
      %14 = sbr.rel (0) target = $region5
    $region4: #{jstnet_forward.1} parent=1 // pred_region
      _
    $region5: #{jstnet_forward.1} parent=1 // pred_fallthru
      _
    // Predicated region
    $region6: #{jstnet_forward.1} parent=1 // pred_check
      _
    $region7: #{jstnet_forward.1} parent=1 // pred_check_branch
      %16 = sbr.rel (0) target = $region9
    $region8: #{jstnet_forward.1} parent=1 // pred_region
      _
    $region9: #{jstnet_forward.1} parent=1 // pred_fallthru
      _
    // Predicated region
    $region10: #{jstnet_forward.1} parent=1 // pred_check
      _
    $region11: #{jstnet_forward.1} parent=1 // pred_check_branch
      %18 = sbr.rel (0) target = $region13
    $region12: #{jstnet_forward.1} parent=1 // pred_region
      %20 = vsyncadd [#allocation3], 0
      %s22 = sshll.u32 %s2, 4
      %s23 = int_to_ptr.hbm [resolvable:$true] %s22
      %s24 = sshll.u32 [#allocation2], 4
      %s25 = int_to_ptr.vmem [resolvable:$true] %s24
      %27 = dma.hbm_to_vmem [thread:$0]  %s23, 1072, %s25, [#allocation3]
    $region13: #{jstnet_forward.1} parent=1 // pred_fallthru
      _
    // Predicated region
    $region14: #{jstnet_forward.1} parent=1 // pred_check
      _
    $region15: #{jstnet_forward.1} parent=1 // pred_check_branch
      %29 = sbr.rel (0) target = $region17
    $region16: #{jstnet_forward.1} parent=1 // pred_region
      %31 = vsyncadd [#allocation6], 0
      %s33 = sshll.u32 %s3, 4
      %s34 = int_to_ptr.hbm [resolvable:$true] %s33
      %s35 = sshll.u32 [#allocation5], 4
      %s36 = int_to_ptr.vmem [resolvable:$true] %s35
      %38 = dma.hbm_to_vmem [thread:$0]  %s34, 2144, %s36, [#allocation6]
    $region17: #{jstnet_forward.1} parent=1 // pred_fallthru
      _
    // Predicated region
    $region18: #{jstnet_forward.1} parent=1 // pred_check
      _
    $region19: #{jstnet_forward.1} parent=1 // pred_check_branch
      %40 = sbr.rel (0) target = $region21
    $region20: #{jstnet_forward.1} parent=1 // pred_region
      _
    $region21: #{jstnet_forward.1} parent=1 // pred_fallthru
      _
    // Predicated region
    $region22: #{jstnet_forward.1} parent=1 // pred_check
      _
    $region23: #{jstnet_forward.1} parent=1 // pred_check_branch
      %42 = sbr.rel (0) target = $region25
    $region24: #{jstnet_forward.1} parent=1 // pred_region
      %44 = dma.done [#allocation3], 1072
    $region25: #{jstnet_forward.1} parent=1 // pred_fallthru
      _
    // Predicated region
    $region26: #{jstnet_forward.1} parent=1 // pred_check
      _
    $region27: #{jstnet_forward.1} parent=1 // pred_check_branch
      %46 = sbr.rel (0) target = $region29
    $region28: #{jstnet_forward.1} parent=1 // pred_region
      %48 = dma.done [#allocation6], 2144
    $region29: #{jstnet_forward.1} parent=1 // pred_fallthru
      _
    %v50 = vld [vmem:[%s0] sm:$0xff]
    %v51 = vld [vmem:[%s0 + $0x8] sm:$0xff]
    %54 = vst [vmem:[#allocation1] ss:$2 sm:$0xff] %v50
    %v55 = vld.sshfl [vmem:[#allocation1] sm:$0xff pattern:$0x75316420]
    %v56 = vld.sshfl [vmem:[#allocation1 + $0x8] sm:$0xff pattern:$0x75316420]
    %s57 = scalar_lea.vmem [#allocation1], 16
    %58 = vst [vmem:[%s57] ss:$2 sm:$0xff] %v51
    %v59 = vld.sshfl [vmem:[#allocation1 + $0x10] sm:$0xff pattern:$0x75316420]
    %v60 = vld.sshfl [vmem:[#allocation1 + $0x18] sm:$0xff pattern:$0x75316420]
    %vm65 = vcmask 1043456
    %v66 = vsel %vm65, %v55, 0.0
    %v67 = vsel %vm65, %v56, 0.0
    %v68 = vadd.f32 %v66, %v67
    %69 = vadd.xlane.f32.xlu0 %v68
    %v70 = vpop.xlane.xlu0 %69
    %v71 = vsel %vm65, %v59, 0.0
    %v72 = vsel %vm65, %v60, 0.0
    %v73 = vadd.f32 %v71, %v72
    %74 = vadd.xlane.f32.xlu0 %v73
    %v75 = vpop.xlane.xlu0 %74
    %v76 = vmul.f32 %v70, 0.00390625
    %v77 = vmul.f32 %v75, 0.00390625
    %v78 = vld [vmem:[%s1] sm:$0xff]
    %v79 = vld [vmem:[%s1 + $0x8] sm:$0xff]
    %v80 = vld [vmem:[%s1 + $0x10] sm:$0xff]
    %v81 = vld [vmem:[%s1 + $0x18] sm:$0xff]
    %v82 = vld [vmem:[%s1 + $0x20] sm:$0xff]
    %v83 = vld [vmem:[%s1 + $0x28] sm:$0xff]
    %v84 = vld [vmem:[%s1 + $0x30] sm:$0xff]
    %v85 = vld [vmem:[%s1 + $0x38] sm:$0xff]
    %v86 = vld [vmem:[%s1 + $0x40] sm:$0xff]
    %v87 = vld [vmem:[%s1 + $0x48] sm:$0xff]
    %v88 = vld [vmem:[%s1 + $0x50] sm:$0xff]
    %v89 = vld [vmem:[%s1 + $0x58] sm:$0xff]
    %v90 = vld [vmem:[%s1 + $0x60] sm:$0xff]
    %v91 = vld [vmem:[%s1 + $0x68] sm:$0xff]
    %v92 = vld [vmem:[%s1 + $0x70] sm:$0xff]
    %v93 = vld [vmem:[%s1 + $0x78] sm:$0xff]
    %v94 = vld [vmem:[%s1 + $0x80] sm:$0x3f]
    %v95 = vunpack.c.l.bf16 %v78
    %v96 = vunpack.c.h.bf16 %v78
    %v97 = vunpack.c.l.bf16 %v79
    %v98 = vunpack.c.h.bf16 %v79
    %v99 = vunpack.c.l.bf16 %v80
    %v100 = vunpack.c.h.bf16 %v80
    %v101 = vunpack.c.l.bf16 %v81
    %v102 = vunpack.c.h.bf16 %v81
    %v103 = vunpack.c.l.bf16 %v82
    %v104 = vunpack.c.h.bf16 %v82
    %v105 = vunpack.c.l.bf16 %v83
    %v106 = vunpack.c.h.bf16 %v83
    %v107 = vunpack.c.l.bf16 %v84
    %v108 = vunpack.c.h.bf16 %v84
    %v109 = vunpack.c.l.bf16 %v85
    %v110 = vunpack.c.h.bf16 %v85
    %v111 = vunpack.c.l.bf16 %v86
    %v112 = vunpack.c.h.bf16 %v86
    %v113 = vunpack.c.l.bf16 %v87
    %v114 = vunpack.c.h.bf16 %v87
    %v115 = vunpack.c.l.bf16 %v88
    %v116 = vunpack.c.h.bf16 %v88
    %v117 = vunpack.c.l.bf16 %v89
    %v118 = vunpack.c.h.bf16 %v89
    %v119 = vunpack.c.l.bf16 %v90
    %v120 = vunpack.c.h.bf16 %v90
    %v121 = vunpack.c.l.bf16 %v91
    %v122 = vunpack.c.h.bf16 %v91
    %v123 = vunpack.c.l.bf16 %v92
    %v124 = vunpack.c.h.bf16 %v92
    %v125 = vunpack.c.l.bf16 %v93
    %v126 = vunpack.c.h.bf16 %v93
    %v127 = vunpack.c.l.bf16 %v94
    %v128 = vunpack.c.h.bf16 %v94
    %v129 = vld [vmem:[#allocation2] sm:$0xff]
    %v130 = vld [vmem:[#allocation2 + $0x8] sm:$0xff]
    %v131 = vld [vmem:[#allocation2 + $0x10] sm:$0xff]
    %v132 = vld [vmem:[#allocation2 + $0x18] sm:$0xff]
    %v133 = vld [vmem:[#allocation2 + $0x20] sm:$0xff]
    %v134 = vld [vmem:[#allocation2 + $0x28] sm:$0xff]
    %v135 = vld [vmem:[#allocation2 + $0x30] sm:$0xff]
    %v136 = vld [vmem:[#allocation2 + $0x38] sm:$0xff]
    %v137 = vld [vmem:[#allocation2 + $0x40] sm:$0x7]
    %v147 = vperm.slane %v129, 0
    %v148 = vperm.slane %v129, 1
    %v149 = vperm.slane %v129, 2
    %v150 = vperm.slane %v129, 3
    %v151 = vperm.slane %v129, 4
    %v152 = vperm.slane %v129, 5
    %v153 = vperm.slane %v129, 6
    %v154 = vperm.slane %v129, 7
    %v155 = vperm.slane %v130, 0
    %v156 = vperm.slane %v130, 1
    %v157 = vperm.slane %v130, 2
    %v158 = vperm.slane %v130, 3
    %v159 = vperm.slane %v130, 4
    %v160 = vperm.slane %v130, 5
    %v161 = vperm.slane %v130, 6
    %v162 = vperm.slane %v130, 7
    %v163 = vperm.slane %v131, 0
    %v164 = vperm.slane %v131, 1
    %v165 = vperm.slane %v131, 2
    %v166 = vperm.slane %v131, 3
    %v167 = vperm.slane %v131, 4
    %v168 = vperm.slane %v131, 5
    %v169 = vperm.slane %v131, 6
    %v170 = vperm.slane %v131, 7
    %v171 = vperm.slane %v132, 0
    %v172 = vperm.slane %v132, 1
    %v173 = vperm.slane %v132, 2
    %v174 = vperm.slane %v132, 3
    %v175 = vperm.slane %v132, 4
    %v176 = vperm.slane %v132, 5
    %v177 = vperm.slane %v132, 6
    %v178 = vperm.slane %v132, 7
    %v179 = vperm.slane %v133, 0
    %v180 = vperm.slane %v133, 1
    %v181 = vperm.slane %v133, 2
    %v182 = vperm.slane %v133, 3
    %v183 = vperm.slane %v133, 4
    %v184 = vperm.slane %v133, 5
    %v185 = vperm.slane %v133, 6
    %v186 = vperm.slane %v133, 7
    %v187 = vperm.slane %v134, 0
    %v188 = vperm.slane %v134, 1
    %v189 = vperm.slane %v134, 2
    %v190 = vperm.slane %v134, 3
    %v191 = vperm.slane %v134, 4
    %v192 = vperm.slane %v134, 5
    %v193 = vperm.slane %v134, 6
    %v194 = vperm.slane %v134, 7
    %v195 = vperm.slane %v135, 0
    %v196 = vperm.slane %v135, 1
    %v197 = vperm.slane %v135, 2
    %v198 = vperm.slane %v135, 3
    %v199 = vperm.slane %v135, 4
    %v200 = vperm.slane %v135, 5
    %v201 = vperm.slane %v135, 6
    %v202 = vperm.slane %v135, 7
    %v203 = vperm.slane %v136, 0
    %v204 = vperm.slane %v136, 1
    %v205 = vperm.slane %v136, 2
    %v206 = vperm.slane %v136, 3
    %v207 = vperm.slane %v136, 4
    %v208 = vperm.slane %v136, 5
    %v209 = vperm.slane %v136, 6
    %v210 = vperm.slane %v136, 7
    %v211 = vperm.slane %v137, 0
    %v212 = vperm.slane %v137, 1
    %v213 = vperm.slane %v137, 2
    %v283 = vlaneseq
    %v284 = vand.u32 %v283, 127
    %v285 = vperm.slane %v76, %v284
    %v286 = vperm.slane %v77, %v284
    %vm287 = vcmask 1041409
    %v288 = vsel %vm287, %v286, %v285
    %323 = vst [vmem:[#allocation1] ss:$2 sm:$0xff] %v95
    %s324 = scalar_lea.vmem [#allocation1], 16
    %325 = vst [vmem:[%s324] ss:$2 sm:$0xff] %v96
    %s326 = scalar_lea.vmem [#allocation1], 32
    %327 = vst [vmem:[%s326] ss:$2 sm:$0xff] %v97
    %s328 = scalar_lea.vmem [#allocation1], 48
    %329 = vst [vmem:[%s328] ss:$2 sm:$0xff] %v98
    %v330 = vld.sshfl [vmem:[#allocation1] sm:$0xff pattern:$0x75316420]
    %v331 = vld.sshfl [vmem:[#allocation1 + $0x8] sm:$0xff pattern:$0x75316420]
    %v332 = vld.sshfl [vmem:[#allocation1 + $0x10] sm:$0xff pattern:$0x75316420]
    %v333 = vld.sshfl [vmem:[#allocation1 + $0x18] sm:$0xff pattern:$0x75316420]
    %v334 = vld.sshfl [vmem:[#allocation1 + $0x20] sm:$0xff pattern:$0x75316420]
    %v335 = vld.sshfl [vmem:[#allocation1 + $0x28] sm:$0xff pattern:$0x75316420]
    %v336 = vld.sshfl [vmem:[#allocation1 + $0x30] sm:$0xff pattern:$0x75316420]
    %v337 = vld.sshfl [vmem:[#allocation1 + $0x38] sm:$0xff pattern:$0x75316420]
    %338 = vst [vmem:[#allocation1] ss:$2 sm:$0xff] %v99
    %339 = vst [vmem:[%s324] ss:$2 sm:$0xff] %v100
    %340 = vst [vmem:[%s326] ss:$2 sm:$0xff] %v101
    %341 = vst [vmem:[%s328] ss:$2 sm:$0xff] %v102
    %v342 = vld.sshfl [vmem:[#allocation1] sm:$0xff pattern:$0x75316420]
    %v343 = vld.sshfl [vmem:[#allocation1 + $0x8] sm:$0xff pattern:$0x75316420]
    %v344 = vld.sshfl [vmem:[#allocation1 + $0x10] sm:$0xff pattern:$0x75316420]
    %v345 = vld.sshfl [vmem:[#allocation1 + $0x18] sm:$0xff pattern:$0x75316420]
    %v346 = vld.sshfl [vmem:[#allocation1 + $0x20] sm:$0xff pattern:$0x75316420]
    %v347 = vld.sshfl [vmem:[#allocation1 + $0x28] sm:$0xff pattern:$0x75316420]
    %v348 = vld.sshfl [vmem:[#allocation1 + $0x30] sm:$0xff pattern:$0x75316420]
    %v349 = vld.sshfl [vmem:[#allocation1 + $0x38] sm:$0xff pattern:$0x75316420]
    %350 = vst [vmem:[#allocation1] ss:$2 sm:$0xff] %v103
    %351 = vst [vmem:[%s324] ss:$2 sm:$0xff] %v104
    %352 = vst [vmem:[%s326] ss:$2 sm:$0xff] %v105
    %353 = vst [vmem:[%s328] ss:$2 sm:$0xff] %v106
    %v354 = vld.sshfl [vmem:[#allocation1] sm:$0xff pattern:$0x75316420]
    %v355 = vld.sshfl [vmem:[#allocation1 + $0x8] sm:$0xff pattern:$0x75316420]
    %v356 = vld.sshfl [vmem:[#allocation1 + $0x10] sm:$0xff pattern:$0x75316420]
    %v357 = vld.sshfl [vmem:[#allocation1 + $0x18] sm:$0xff pattern:$0x75316420]
    %v358 = vld.sshfl [vmem:[#allocation1 + $0x20] sm:$0xff pattern:$0x75316420]
    %v359 = vld.sshfl [vmem:[#allocation1 + $0x28] sm:$0xff pattern:$0x75316420]
    %v360 = vld.sshfl [vmem:[#allocation1 + $0x30] sm:$0xff pattern:$0x75316420]
    %v361 = vld.sshfl [vmem:[#allocation1 + $0x38] sm:$0xff pattern:$0x75316420]
    %362 = vst [vmem:[#allocation1] ss:$2 sm:$0xff] %v107
    %363 = vst [vmem:[%s324] ss:$2 sm:$0xff] %v108
    %364 = vst [vmem:[%s326] ss:$2 sm:$0xff] %v109
    %365 = vst [vmem:[%s328] ss:$2 sm:$0xff] %v110
    %v366 = vld.sshfl [vmem:[#allocation1] sm:$0xff pattern:$0x75316420]
    %v367 = vld.sshfl [vmem:[#allocation1 + $0x8] sm:$0xff pattern:$0x75316420]
    %v368 = vld.sshfl [vmem:[#allocation1 + $0x10] sm:$0xff pattern:$0x75316420]
    %v369 = vld.sshfl [vmem:[#allocation1 + $0x18] sm:$0xff pattern:$0x75316420]
    %v370 = vld.sshfl [vmem:[#allocation1 + $0x20] sm:$0xff pattern:$0x75316420]
    %v371 = vld.sshfl [vmem:[#allocation1 + $0x28] sm:$0xff pattern:$0x75316420]
    %v372 = vld.sshfl [vmem:[#allocation1 + $0x30] sm:$0xff pattern:$0x75316420]
    %v373 = vld.sshfl [vmem:[#allocation1 + $0x38] sm:$0xff pattern:$0x75316420]
    %374 = vst [vmem:[#allocation1] ss:$2 sm:$0xff] %v111
    %375 = vst [vmem:[%s324] ss:$2 sm:$0xff] %v112
    %376 = vst [vmem:[%s326] ss:$2 sm:$0xff] %v113
    %377 = vst [vmem:[%s328] ss:$2 sm:$0xff] %v114
    %v378 = vld.sshfl [vmem:[#allocation1] sm:$0xff pattern:$0x75316420]
    %v379 = vld.sshfl [vmem:[#allocation1 + $0x8] sm:$0xff pattern:$0x75316420]
    %v380 = vld.sshfl [vmem:[#allocation1 + $0x10] sm:$0xff pattern:$0x75316420]
    %v381 = vld.sshfl [vmem:[#allocation1 + $0x18] sm:$0xff pattern:$0x75316420]
    %v382 = vld.sshfl [vmem:[#allocation1 + $0x20] sm:$0xff pattern:$0x75316420]
    %v383 = vld.sshfl [vmem:[#allocation1 + $0x28] sm:$0xff pattern:$0x75316420]
    %v384 = vld.sshfl [vmem:[#allocation1 + $0x30] sm:$0xff pattern:$0x75316420]
    %v385 = vld.sshfl [vmem:[#allocation1 + $0x38] sm:$0xff pattern:$0x75316420]
    %386 = vst [vmem:[#allocation1] ss:$2 sm:$0xff] %v115
    %387 = vst [vmem:[%s324] ss:$2 sm:$0xff] %v116
    %388 = vst [vmem:[%s326] ss:$2 sm:$0xff] %v117
    %389 = vst [vmem:[%s328] ss:$2 sm:$0xff] %v118
    %v390 = vld.sshfl [vmem:[#allocation1] sm:$0xff pattern:$0x75316420]
    %v391 = vld.sshfl [vmem:[#allocation1 + $0x8] sm:$0xff pattern:$0x75316420]
    %v392 = vld.sshfl [vmem:[#allocation1 + $0x10] sm:$0xff pattern:$0x75316420]
    %v393 = vld.sshfl [vmem:[#allocation1 + $0x18] sm:$0xff pattern:$0x75316420]
    %v394 = vld.sshfl [vmem:[#allocation1 + $0x20] sm:$0xff pattern:$0x75316420]
    %v395 = vld.sshfl [vmem:[#allocation1 + $0x28] sm:$0xff pattern:$0x75316420]
    %v396 = vld.sshfl [vmem:[#allocation1 + $0x30] sm:$0xff pattern:$0x75316420]
    %v397 = vld.sshfl [vmem:[#allocation1 + $0x38] sm:$0xff pattern:$0x75316420]
    %398 = vst [vmem:[#allocation1] ss:$2 sm:$0xff] %v119
    %399 = vst [vmem:[%s324] ss:$2 sm:$0xff] %v120
    %400 = vst [vmem:[%s326] ss:$2 sm:$0xff] %v121
    %401 = vst [vmem:[%s328] ss:$2 sm:$0xff] %v122
    %v402 = vld.sshfl [vmem:[#allocation1] sm:$0xff pattern:$0x75316420]
    %v403 = vld.sshfl [vmem:[#allocation1 + $0x8] sm:$0xff pattern:$0x75316420]
    %v404 = vld.sshfl [vmem:[#allocation1 + $0x10] sm:$0xff pattern:$0x75316420]
    %v405 = vld.sshfl [vmem:[#allocation1 + $0x18] sm:$0xff pattern:$0x75316420]
    %v406 = vld.sshfl [vmem:[#allocation1 + $0x20] sm:$0xff pattern:$0x75316420]
    %v407 = vld.sshfl [vmem:[#allocation1 + $0x28] sm:$0xff pattern:$0x75316420]
    %v408 = vld.sshfl [vmem:[#allocation1 + $0x30] sm:$0xff pattern:$0x75316420]
    %v409 = vld.sshfl [vmem:[#allocation1 + $0x38] sm:$0xff pattern:$0x75316420]
    %410 = vst [vmem:[#allocation1] ss:$2 sm:$0xff] %v123
    %411 = vst [vmem:[%s324] ss:$2 sm:$0xff] %v124
    %412 = vst [vmem:[%s326] ss:$2 sm:$0xff] %v125
    %413 = vst [vmem:[%s328] ss:$2 sm:$0xff] %v126
    %v414 = vld.sshfl [vmem:[#allocation1] sm:$0xff pattern:$0x75316420]
    %v415 = vld.sshfl [vmem:[#allocation1 + $0x8] sm:$0xff pattern:$0x75316420]
    %v416 = vld.sshfl [vmem:[#allocation1 + $0x10] sm:$0xff pattern:$0x75316420]
    %v417 = vld.sshfl [vmem:[#allocation1 + $0x18] sm:$0xff pattern:$0x75316420]
    %v418 = vld.sshfl [vmem:[#allocation1 + $0x20] sm:$0xff pattern:$0x75316420]
    %v419 = vld.sshfl [vmem:[#allocation1 + $0x28] sm:$0xff pattern:$0x75316420]
    %v420 = vld.sshfl [vmem:[#allocation1 + $0x30] sm:$0xff pattern:$0x75316420]
    %v421 = vld.sshfl [vmem:[#allocation1 + $0x38] sm:$0xff pattern:$0x75316420]
    %422 = vst [vmem:[#allocation1] ss:$2 sm:$0xff] %v127
    %423 = vst [vmem:[%s324] ss:$2 sm:$0xff] %v128
    %v424 = vld.sshfl [vmem:[#allocation1] sm:$0xff pattern:$0x75316420]
    %v425 = vld.sshfl [vmem:[#allocation1 + $0x8] sm:$0xff pattern:$0x75316420]
    %v426 = vld.sshfl [vmem:[#allocation1 + $0x10] sm:$0xff pattern:$0x75316420]
    %vm427 = vcmask 31744
    %v428 = vsel %vm427, %v288, 0
    %v430 = vsel %vm65, %v330, 0
    %v432 = vsel %vm65, %v331, 0
    %v434 = vsel %vm65, %v332, 0
    %v436 = vsel %vm65, %v333, 0
    %v438 = vsel %vm65, %v334, 0
    %v440 = vsel %vm65, %v335, 0
    %v442 = vsel %vm65, %v336, 0
    %v444 = vsel %vm65, %v337, 0
    %v446 = vsel %vm65, %v342, 0
    %v448 = vsel %vm65, %v343, 0
    %v450 = vsel %vm65, %v344, 0
    %v452 = vsel %vm65, %v345, 0
    %v454 = vsel %vm65, %v346, 0
    %v456 = vsel %vm65, %v347, 0
    %v458 = vsel %vm65, %v348, 0
    %v460 = vsel %vm65, %v349, 0
    %v462 = vsel %vm65, %v354, 0
    %v464 = vsel %vm65, %v355, 0
    %v466 = vsel %vm65, %v356, 0
    %v468 = vsel %vm65, %v357, 0
    %v470 = vsel %vm65, %v358, 0
    %v472 = vsel %vm65, %v359, 0
    %v474 = vsel %vm65, %v360, 0
    %v476 = vsel %vm65, %v361, 0
    %v478 = vsel %vm65, %v366, 0
    %v480 = vsel %vm65, %v367, 0
    %v482 = vsel %vm65, %v368, 0
    %v484 = vsel %vm65, %v369, 0
    %v486 = vsel %vm65, %v370, 0
    %v488 = vsel %vm65, %v371, 0
    %v490 = vsel %vm65, %v372, 0
    %v492 = vsel %vm65, %v373, 0
    %v494 = vsel %vm65, %v378, 0
    %v496 = vsel %vm65, %v379, 0
    %v498 = vsel %vm65, %v380, 0
    %v500 = vsel %vm65, %v381, 0
    %v502 = vsel %vm65, %v382, 0
    %v504 = vsel %vm65, %v383, 0
    %v506 = vsel %vm65, %v384, 0
    %v508 = vsel %vm65, %v385, 0
    %v510 = vsel %vm65, %v390, 0
    %v512 = vsel %vm65, %v391, 0
    %v514 = vsel %vm65, %v392, 0
    %v516 = vsel %vm65, %v393, 0
    %v518 = vsel %vm65, %v394, 0
    %v520 = vsel %vm65, %v395, 0
    %v522 = vsel %vm65, %v396, 0
    %v524 = vsel %vm65, %v397, 0
    %v526 = vsel %vm65, %v402, 0
    %v528 = vsel %vm65, %v403, 0
    %v530 = vsel %vm65, %v404, 0
    %v532 = vsel %vm65, %v405, 0
    %v534 = vsel %vm65, %v406, 0
    %v536 = vsel %vm65, %v407, 0
    %v538 = vsel %vm65, %v408, 0
    %v540 = vsel %vm65, %v409, 0
    %v542 = vsel %vm65, %v414, 0
    %v544 = vsel %vm65, %v415, 0
    %v546 = vsel %vm65, %v416, 0
    %v548 = vsel %vm65, %v417, 0
    %v550 = vsel %vm65, %v418, 0
    %v552 = vsel %vm65, %v419, 0
    %v554 = vsel %vm65, %v420, 0
    %v556 = vsel %vm65, %v421, 0
    %v558 = vsel %vm65, %v424, 0
    %v560 = vsel %vm65, %v425, 0
    %v562 = vsel %vm65, %v426, 0
    %564 = vmatpush.msra.mxu0 0.0
    %565 = vmatpush.msra.mxu0 0.0
    %566 = vmatpush.msra.mxu0 0.0
    %567 = vmatpush.msra.mxu0 0.0
    %568 = vmatpush.msra.mxu0 0.0
    %569 = vmatpush.msra.mxu0 0.0
    %570 = vmatpush.msra.mxu0 0.0
    %571 = vmatpush.msra.mxu0 0.0
    %572 = vmatpush.msra.mxu0 0.0
    %573 = vmatpush.msra.mxu0 0.0
    %574 = vmatpush.msra.mxu0 0.0
    %575 = vmatpush.msra.mxu0 0.0
    %576 = vmatpush.msra.mxu0 0.0
    %577 = vmatpush.msra.mxu0 0.0
    %578 = vmatpush.msra.mxu0 0.0
    %579 = vmatpush.msra.mxu0 %v430
    %580 = vmatmul.f32.gmra.mxu0 %v428
    %v581 = vpop.f32.mrf.mxu0
    %v582 = vadd.f32 %v147, %v581
    %583 = vdwg.mxu0
    %584 = vmatpush.msra.mxu0 0.0
    %585 = vmatpush.msra.mxu0 0.0
    %586 = vmatpush.msra.mxu0 0.0
    %587 = vmatpush.msra.mxu0 0.0
    %588 = vmatpush.msra.mxu0 0.0
    %589 = vmatpush.msra.mxu0 0.0
    %590 = vmatpush.msra.mxu0 0.0
    %591 = vmatpush.msra.mxu0 0.0
    %592 = vmatpush.msra.mxu0 0.0
    %593 = vmatpush.msra.mxu0 0.0
    %594 = vmatpush.msra.mxu0 0.0
    %595 = vmatpush.msra.mxu0 0.0
    %596 = vmatpush.msra.mxu0 0.0
    %597 = vmatpush.msra.mxu0 0.0
    %598 = vmatpush.msra.mxu0 0.0
    %599 = vmatpush.msra.mxu0 %v432
    %600 = vmatmul.f32.gmra.mxu0 %v428
    %v601 = vpop.f32.mrf.mxu0
    %v602 = vadd.f32 %v148, %v601
    %603 = vdwg.mxu0
    %604 = vmatpush.msra.mxu0 0.0
    %605 = vmatpush.msra.mxu0 0.0
    %606 = vmatpush.msra.mxu0 0.0
    %607 = vmatpush.msra.mxu0 0.0
    %608 = vmatpush.msra.mxu0 0.0
    %609 = vmatpush.msra.mxu0 0.0
    %610 = vmatpush.msra.mxu0 0.0
    %611 = vmatpush.msra.mxu0 0.0
    %612 = vmatpush.msra.mxu0 0.0
    %613 = vmatpush.msra.mxu0 0.0
    %614 = vmatpush.msra.mxu0 0.0
    %615 = vmatpush.msra.mxu0 0.0
    %616 = vmatpush.msra.mxu0 0.0
    %617 = vmatpush.msra.mxu0 0.0
    %618 = vmatpush.msra.mxu0 0.0
    %619 = vmatpush.msra.mxu0 %v434
    %620 = vmatmul.f32.gmra.mxu0 %v428
    %v621 = vpop.f32.mrf.mxu0
    %v622 = vadd.f32 %v149, %v621
    %623 = vdwg.mxu0
    %624 = vmatpush.msra.mxu0 0.0
    %625 = vmatpush.msra.mxu0 0.0
    %626 = vmatpush.msra.mxu0 0.0
    %627 = vmatpush.msra.mxu0 0.0
    %628 = vmatpush.msra.mxu0 0.0
    %629 = vmatpush.msra.mxu0 0.0
    %630 = vmatpush.msra.mxu0 0.0
    %631 = vmatpush.msra.mxu0 0.0
    %632 = vmatpush.msra.mxu0 0.0
    %633 = vmatpush.msra.mxu0 0.0
    %634 = vmatpush.msra.mxu0 0.0
    %635 = vmatpush.msra.mxu0 0.0
    %636 = vmatpush.msra.mxu0 0.0
    %637 = vmatpush.msra.mxu0 0.0
    %638 = vmatpush.msra.mxu0 0.0
    %639 = vmatpush.msra.mxu0 %v436
    %640 = vmatmul.f32.gmra.mxu0 %v428
    %v641 = vpop.f32.mrf.mxu0
    %v642 = vadd.f32 %v150, %v641
    %643 = vdwg.mxu0
    %644 = vmatpush.msra.mxu0 0.0
    %645 = vmatpush.msra.mxu0 0.0
    %646 = vmatpush.msra.mxu0 0.0
    %647 = vmatpush.msra.mxu0 0.0
    %648 = vmatpush.msra.mxu0 0.0
    %649 = vmatpush.msra.mxu0 0.0
    %650 = vmatpush.msra.mxu0 0.0
    %651 = vmatpush.msra.mxu0 0.0
    %652 = vmatpush.msra.mxu0 0.0
    %653 = vmatpush.msra.mxu0 0.0
    %654 = vmatpush.msra.mxu0 0.0
    %655 = vmatpush.msra.mxu0 0.0
    %656 = vmatpush.msra.mxu0 0.0
    %657 = vmatpush.msra.mxu0 0.0
    %658 = vmatpush.msra.mxu0 0.0
    %659 = vmatpush.msra.mxu0 %v438
    %660 = vmatmul.f32.gmra.mxu0 %v428
    %v661 = vpop.f32.mrf.mxu0
    %v662 = vadd.f32 %v151, %v661
    %663 = vdwg.mxu0
    %664 = vmatpush.msra.mxu0 0.0
    %665 = vmatpush.msra.mxu0 0.0
    %666 = vmatpush.msra.mxu0 0.0
    %667 = vmatpush.msra.mxu0 0.0
    %668 = vmatpush.msra.mxu0 0.0
    %669 = vmatpush.msra.mxu0 0.0
    %670 = vmatpush.msra.mxu0 0.0
    %671 = vmatpush.msra.mxu0 0.0
    %672 = vmatpush.msra.mxu0 0.0
    %673 = vmatpush.msra.mxu0 0.0
    %674 = vmatpush.msra.mxu0 0.0
    %675 = vmatpush.msra.mxu0 0.0
    %676 = vmatpush.msra.mxu0 0.0
    %677 = vmatpush.msra.mxu0 0.0
    %678 = vmatpush.msra.mxu0 0.0
    %679 = vmatpush.msra.mxu0 %v440
    %680 = vmatmul.f32.gmra.mxu0 %v428
    %v681 = vpop.f32.mrf.mxu0
    %v682 = vadd.f32 %v152, %v681
    %683 = vdwg.mxu0
    %684 = vmatpush.msra.mxu0 0.0
    %685 = vmatpush.msra.mxu0 0.0
    %686 = vmatpush.msra.mxu0 0.0
    %687 = vmatpush.msra.mxu0 0.0
    %688 = vmatpush.msra.mxu0 0.0
    %689 = vmatpush.msra.mxu0 0.0
    %690 = vmatpush.msra.mxu0 0.0
    %691 = vmatpush.msra.mxu0 0.0
    %692 = vmatpush.msra.mxu0 0.0
    %693 = vmatpush.msra.mxu0 0.0
    %694 = vmatpush.msra.mxu0 0.0
    %695 = vmatpush.msra.mxu0 0.0
    %696 = vmatpush.msra.mxu0 0.0
    %697 = vmatpush.msra.mxu0 0.0
    %698 = vmatpush.msra.mxu0 0.0
    %699 = vmatpush.msra.mxu0 %v442
    %700 = vmatmul.f32.gmra.mxu0 %v428
    %v701 = vpop.f32.mrf.mxu0
    %v702 = vadd.f32 %v153, %v701
    %703 = vdwg.mxu0
    %704 = vmatpush.msra.mxu0 0.0
    %705 = vmatpush.msra.mxu0 0.0
    %706 = vmatpush.msra.mxu0 0.0
    %707 = vmatpush.msra.mxu0 0.0
    %708 = vmatpush.msra.mxu0 0.0
    %709 = vmatpush.msra.mxu0 0.0
    %710 = vmatpush.msra.mxu0 0.0
    %711 = vmatpush.msra.mxu0 0.0
    %712 = vmatpush.msra.mxu0 0.0
    %713 = vmatpush.msra.mxu0 0.0
    %714 = vmatpush.msra.mxu0 0.0
    %715 = vmatpush.msra.mxu0 0.0
    %716 = vmatpush.msra.mxu0 0.0
    %717 = vmatpush.msra.mxu0 0.0
    %718 = vmatpush.msra.mxu0 0.0
    %719 = vmatpush.msra.mxu0 %v444
    %720 = vmatmul.f32.gmra.mxu0 %v428
    %v721 = vpop.f32.mrf.mxu0
    %v722 = vadd.f32 %v154, %v721
    %723 = vdwg.mxu0
    %724 = vmatpush.msra.mxu0 0.0
    %725 = vmatpush.msra.mxu0 0.0
    %726 = vmatpush.msra.mxu0 0.0
    %727 = vmatpush.msra.mxu0 0.0
    %728 = vmatpush.msra.mxu0 0.0
    %729 = vmatpush.msra.mxu0 0.0
    %730 = vmatpush.msra.mxu0 0.0
    %731 = vmatpush.msra.mxu0 0.0
    %732 = vmatpush.msra.mxu0 0.0
    %733 = vmatpush.msra.mxu0 0.0
    %734 = vmatpush.msra.mxu0 0.0
    %735 = vmatpush.msra.mxu0 0.0
    %736 = vmatpush.msra.mxu0 0.0
    %737 = vmatpush.msra.mxu0 0.0
    %738 = vmatpush.msra.mxu0 0.0
    %739 = vmatpush.msra.mxu0 %v446
    %740 = vmatmul.f32.gmra.mxu0 %v428
    %v741 = vpop.f32.mrf.mxu0
    %v742 = vadd.f32 %v155, %v741
    %743 = vdwg.mxu0
    %744 = vmatpush.msra.mxu0 0.0
    %745 = vmatpush.msra.mxu0 0.0
    %746 = vmatpush.msra.mxu0 0.0
    %747 = vmatpush.msra.mxu0 0.0
    %748 = vmatpush.msra.mxu0 0.0
    %749 = vmatpush.msra.mxu0 0.0
    %750 = vmatpush.msra.mxu0 0.0
    %751 = vmatpush.msra.mxu0 0.0
    %752 = vmatpush.msra.mxu0 0.0
    %753 = vmatpush.msra.mxu0 0.0
    %754 = vmatpush.msra.mxu0 0.0
    %755 = vmatpush.msra.mxu0 0.0
    %756 = vmatpush.msra.mxu0 0.0
    %757 = vmatpush.msra.mxu0 0.0
    %758 = vmatpush.msra.mxu0 0.0
    %759 = vmatpush.msra.mxu0 %v448
    %760 = vmatmul.f32.gmra.mxu0 %v428
    %v761 = vpop.f32.mrf.mxu0
    %v762 = vadd.f32 %v156, %v761
    %763 = vdwg.mxu0
    %764 = vmatpush.msra.mxu0 0.0
    %765 = vmatpush.msra.mxu0 0.0
    %766 = vmatpush.msra.mxu0 0.0
    %767 = vmatpush.msra.mxu0 0.0
    %768 = vmatpush.msra.mxu0 0.0
    %769 = vmatpush.msra.mxu0 0.0
    %770 = vmatpush.msra.mxu0 0.0
    %771 = vmatpush.msra.mxu0 0.0
    %772 = vmatpush.msra.mxu0 0.0
    %773 = vmatpush.msra.mxu0 0.0
    %774 = vmatpush.msra.mxu0 0.0
    %775 = vmatpush.msra.mxu0 0.0
    %776 = vmatpush.msra.mxu0 0.0
    %777 = vmatpush.msra.mxu0 0.0
    %778 = vmatpush.msra.mxu0 0.0
    %779 = vmatpush.msra.mxu0 %v450
    %780 = vmatmul.f32.gmra.mxu0 %v428
    %v781 = vpop.f32.mrf.mxu0
    %v782 = vadd.f32 %v157, %v781
    %783 = vdwg.mxu0
    %784 = vmatpush.msra.mxu0 0.0
    %785 = vmatpush.msra.mxu0 0.0
    %786 = vmatpush.msra.mxu0 0.0
    %787 = vmatpush.msra.mxu0 0.0
    %788 = vmatpush.msra.mxu0 0.0
    %789 = vmatpush.msra.mxu0 0.0
    %790 = vmatpush.msra.mxu0 0.0
    %791 = vmatpush.msra.mxu0 0.0
    %792 = vmatpush.msra.mxu0 0.0
    %793 = vmatpush.msra.mxu0 0.0
    %794 = vmatpush.msra.mxu0 0.0
    %795 = vmatpush.msra.mxu0 0.0
    %796 = vmatpush.msra.mxu0 0.0
    %797 = vmatpush.msra.mxu0 0.0
    %798 = vmatpush.msra.mxu0 0.0
    %799 = vmatpush.msra.mxu0 %v452
    %800 = vmatmul.f32.gmra.mxu0 %v428
    %v801 = vpop.f32.mrf.mxu0
    %v802 = vadd.f32 %v158, %v801
    %803 = vdwg.mxu0
    %804 = vmatpush.msra.mxu0 0.0
    %805 = vmatpush.msra.mxu0 0.0
    %806 = vmatpush.msra.mxu0 0.0
    %807 = vmatpush.msra.mxu0 0.0
    %808 = vmatpush.msra.mxu0 0.0
    %809 = vmatpush.msra.mxu0 0.0
    %810 = vmatpush.msra.mxu0 0.0
    %811 = vmatpush.msra.mxu0 0.0
    %812 = vmatpush.msra.mxu0 0.0
    %813 = vmatpush.msra.mxu0 0.0
    %814 = vmatpush.msra.mxu0 0.0
    %815 = vmatpush.msra.mxu0 0.0
    %816 = vmatpush.msra.mxu0 0.0
    %817 = vmatpush.msra.mxu0 0.0
    %818 = vmatpush.msra.mxu0 0.0
    %819 = vmatpush.msra.mxu0 %v454
    %820 = vmatmul.f32.gmra.mxu0 %v428
    %v821 = vpop.f32.mrf.mxu0
    %v822 = vadd.f32 %v159, %v821
    %823 = vdwg.mxu0
    %824 = vmatpush.msra.mxu0 0.0
    %825 = vmatpush.msra.mxu0 0.0
    %826 = vmatpush.msra.mxu0 0.0
    %827 = vmatpush.msra.mxu0 0.0
    %828 = vmatpush.msra.mxu0 0.0
    %829 = vmatpush.msra.mxu0 0.0
    %830 = vmatpush.msra.mxu0 0.0
    %831 = vmatpush.msra.mxu0 0.0
    %832 = vmatpush.msra.mxu0 0.0
    %833 = vmatpush.msra.mxu0 0.0
    %834 = vmatpush.msra.mxu0 0.0
    %835 = vmatpush.msra.mxu0 0.0
    %836 = vmatpush.msra.mxu0 0.0
    %837 = vmatpush.msra.mxu0 0.0
    %838 = vmatpush.msra.mxu0 0.0
    %839 = vmatpush.msra.mxu0 %v456
    %840 = vmatmul.f32.gmra.mxu0 %v428
    %v841 = vpop.f32.mrf.mxu0
    %v842 = vadd.f32 %v160, %v841
    %843 = vdwg.mxu0
    %844 = vmatpush.msra.mxu0 0.0
    %845 = vmatpush.msra.mxu0 0.0
    %846 = vmatpush.msra.mxu0 0.0
    %847 = vmatpush.msra.mxu0 0.0
    %848 = vmatpush.msra.mxu0 0.0
    %849 = vmatpush.msra.mxu0 0.0
    %850 = vmatpush.msra.mxu0 0.0
    %851 = vmatpush.msra.mxu0 0.0
    %852 = vmatpush.msra.mxu0 0.0
    %853 = vmatpush.msra.mxu0 0.0
    %854 = vmatpush.msra.mxu0 0.0
    %855 = vmatpush.msra.mxu0 0.0
    %856 = vmatpush.msra.mxu0 0.0
    %857 = vmatpush.msra.mxu0 0.0
    %858 = vmatpush.msra.mxu0 0.0
    %859 = vmatpush.msra.mxu0 %v458
    %860 = vmatmul.f32.gmra.mxu0 %v428
    %v861 = vpop.f32.mrf.mxu0
    %v862 = vadd.f32 %v161, %v861
    %863 = vdwg.mxu0
    %864 = vmatpush.msra.mxu0 0.0
    %865 = vmatpush.msra.mxu0 0.0
    %866 = vmatpush.msra.mxu0 0.0
    %867 = vmatpush.msra.mxu0 0.0
    %868 = vmatpush.msra.mxu0 0.0
    %869 = vmatpush.msra.mxu0 0.0
    %870 = vmatpush.msra.mxu0 0.0
    %871 = vmatpush.msra.mxu0 0.0
    %872 = vmatpush.msra.mxu0 0.0
    %873 = vmatpush.msra.mxu0 0.0
    %874 = vmatpush.msra.mxu0 0.0
    %875 = vmatpush.msra.mxu0 0.0
    %876 = vmatpush.msra.mxu0 0.0
    %877 = vmatpush.msra.mxu0 0.0
    %878 = vmatpush.msra.mxu0 0.0
    %879 = vmatpush.msra.mxu0 %v460
    %880 = vmatmul.f32.gmra.mxu0 %v428
    %v881 = vpop.f32.mrf.mxu0
    %v882 = vadd.f32 %v162, %v881
    %883 = vdwg.mxu0
    %884 = vmatpush.msra.mxu0 0.0
    %885 = vmatpush.msra.mxu0 0.0
    %886 = vmatpush.msra.mxu0 0.0
    %887 = vmatpush.msra.mxu0 0.0
    %888 = vmatpush.msra.mxu0 0.0
    %889 = vmatpush.msra.mxu0 0.0
    %890 = vmatpush.msra.mxu0 0.0
    %891 = vmatpush.msra.mxu0 0.0
    %892 = vmatpush.msra.mxu0 0.0
    %893 = vmatpush.msra.mxu0 0.0
    %894 = vmatpush.msra.mxu0 0.0
    %895 = vmatpush.msra.mxu0 0.0
    %896 = vmatpush.msra.mxu0 0.0
    %897 = vmatpush.msra.mxu0 0.0
    %898 = vmatpush.msra.mxu0 0.0
    %899 = vmatpush.msra.mxu0 %v462
    %900 = vmatmul.f32.gmra.mxu0 %v428
    %v901 = vpop.f32.mrf.mxu0
    %v902 = vadd.f32 %v163, %v901
    %903 = vdwg.mxu0
    %904 = vmatpush.msra.mxu0 0.0
    %905 = vmatpush.msra.mxu0 0.0
    %906 = vmatpush.msra.mxu0 0.0
    %907 = vmatpush.msra.mxu0 0.0
    %908 = vmatpush.msra.mxu0 0.0
    %909 = vmatpush.msra.mxu0 0.0
    %910 = vmatpush.msra.mxu0 0.0
    %911 = vmatpush.msra.mxu0 0.0
    %912 = vmatpush.msra.mxu0 0.0
    %913 = vmatpush.msra.mxu0 0.0
    %914 = vmatpush.msra.mxu0 0.0
    %915 = vmatpush.msra.mxu0 0.0
    %916 = vmatpush.msra.mxu0 0.0
    %917 = vmatpush.msra.mxu0 0.0
    %918 = vmatpush.msra.mxu0 0.0
    %919 = vmatpush.msra.mxu0 %v464
    %920 = vmatmul.f32.gmra.mxu0 %v428
    %v921 = vpop.f32.mrf.mxu0
    %v922 = vadd.f32 %v164, %v921
    %923 = vdwg.mxu0
    %924 = vmatpush.msra.mxu0 0.0
    %925 = vmatpush.msra.mxu0 0.0
    %926 = vmatpush.msra.mxu0 0.0
    %927 = vmatpush.msra.mxu0 0.0
    %928 = vmatpush.msra.mxu0 0.0
    %929 = vmatpush.msra.mxu0 0.0
    %930 = vmatpush.msra.mxu0 0.0
    %931 = vmatpush.msra.mxu0 0.0
    %932 = vmatpush.msra.mxu0 0.0
    %933 = vmatpush.msra.mxu0 0.0
    %934 = vmatpush.msra.mxu0 0.0
    %935 = vmatpush.msra.mxu0 0.0
    %936 = vmatpush.msra.mxu0 0.0
    %937 = vmatpush.msra.mxu0 0.0
    %938 = vmatpush.msra.mxu0 0.0
    %939 = vmatpush.msra.mxu0 %v466
    %940 = vmatmul.f32.gmra.mxu0 %v428
    %v941 = vpop.f32.mrf.mxu0
    %v942 = vadd.f32 %v165, %v941
    %943 = vdwg.mxu0
    %944 = vmatpush.msra.mxu0 0.0
    %945 = vmatpush.msra.mxu0 0.0
    %946 = vmatpush.msra.mxu0 0.0
    %947 = vmatpush.msra.mxu0 0.0
    %948 = vmatpush.msra.mxu0 0.0
    %949 = vmatpush.msra.mxu0 0.0
    %950 = vmatpush.msra.mxu0 0.0
    %951 = vmatpush.msra.mxu0 0.0
    %952 = vmatpush.msra.mxu0 0.0
    %953 = vmatpush.msra.mxu0 0.0
    %954 = vmatpush.msra.mxu0 0.0
    %955 = vmatpush.msra.mxu0 0.0
    %956 = vmatpush.msra.mxu0 0.0
    %957 = vmatpush.msra.mxu0 0.0
    %958 = vmatpush.msra.mxu0 0.0
    %959 = vmatpush.msra.mxu0 %v468
    %960 = vmatmul.f32.gmra.mxu0 %v428
    %v961 = vpop.f32.mrf.mxu0
    %v962 = vadd.f32 %v166, %v961
    %963 = vdwg.mxu0
    %964 = vmatpush.msra.mxu0 0.0
    %965 = vmatpush.msra.mxu0 0.0
    %966 = vmatpush.msra.mxu0 0.0
    %967 = vmatpush.msra.mxu0 0.0
    %968 = vmatpush.msra.mxu0 0.0
    %969 = vmatpush.msra.mxu0 0.0
    %970 = vmatpush.msra.mxu0 0.0
    %971 = vmatpush.msra.mxu0 0.0
    %972 = vmatpush.msra.mxu0 0.0
    %973 = vmatpush.msra.mxu0 0.0
    %974 = vmatpush.msra.mxu0 0.0
    %975 = vmatpush.msra.mxu0 0.0
    %976 = vmatpush.msra.mxu0 0.0
    %977 = vmatpush.msra.mxu0 0.0
    %978 = vmatpush.msra.mxu0 0.0
    %979 = vmatpush.msra.mxu0 %v470
    %980 = vmatmul.f32.gmra.mxu0 %v428
    %v981 = vpop.f32.mrf.mxu0
    %v982 = vadd.f32 %v167, %v981
    %983 = vdwg.mxu0
    %984 = vmatpush.msra.mxu0 0.0
    %985 = vmatpush.msra.mxu0 0.0
    %986 = vmatpush.msra.mxu0 0.0
    %987 = vmatpush.msra.mxu0 0.0
    %988 = vmatpush.msra.mxu0 0.0
    %989 = vmatpush.msra.mxu0 0.0
    %990 = vmatpush.msra.mxu0 0.0
    %991 = vmatpush.msra.mxu0 0.0
    %992 = vmatpush.msra.mxu0 0.0
    %993 = vmatpush.msra.mxu0 0.0
    %994 = vmatpush.msra.mxu0 0.0
    %995 = vmatpush.msra.mxu0 0.0
    %996 = vmatpush.msra.mxu0 0.0
    %997 = vmatpush.msra.mxu0 0.0
    %998 = vmatpush.msra.mxu0 0.0
    %999 = vmatpush.msra.mxu0 %v472
    %1000 = vmatmul.f32.gmra.mxu0 %v428
    %v1001 = vpop.f32.mrf.mxu0
    %v1002 = vadd.f32 %v168, %v1001
    %1003 = vdwg.mxu0
    %1004 = vmatpush.msra.mxu0 0.0
    %1005 = vmatpush.msra.mxu0 0.0
    %1006 = vmatpush.msra.mxu0 0.0
    %1007 = vmatpush.msra.mxu0 0.0
    %1008 = vmatpush.msra.mxu0 0.0
    %1009 = vmatpush.msra.mxu0 0.0
    %1010 = vmatpush.msra.mxu0 0.0
    %1011 = vmatpush.msra.mxu0 0.0
    %1012 = vmatpush.msra.mxu0 0.0
    %1013 = vmatpush.msra.mxu0 0.0
    %1014 = vmatpush.msra.mxu0 0.0
    %1015 = vmatpush.msra.mxu0 0.0
    %1016 = vmatpush.msra.mxu0 0.0
    %1017 = vmatpush.msra.mxu0 0.0
    %1018 = vmatpush.msra.mxu0 0.0
    %1019 = vmatpush.msra.mxu0 %v474
    %1020 = vmatmul.f32.gmra.mxu0 %v428
    %v1021 = vpop.f32.mrf.mxu0
    %v1022 = vadd.f32 %v169, %v1021
    %1023 = vdwg.mxu0
    %1024 = vmatpush.msra.mxu0 0.0
    %1025 = vmatpush.msra.mxu0 0.0
    %1026 = vmatpush.msra.mxu0 0.0
    %1027 = vmatpush.msra.mxu0 0.0
    %1028 = vmatpush.msra.mxu0 0.0
    %1029 = vmatpush.msra.mxu0 0.0
    %1030 = vmatpush.msra.mxu0 0.0
    %1031 = vmatpush.msra.mxu0 0.0
    %1032 = vmatpush.msra.mxu0 0.0
    %1033 = vmatpush.msra.mxu0 0.0
    %1034 = vmatpush.msra.mxu0 0.0
    %1035 = vmatpush.msra.mxu0 0.0
    %1036 = vmatpush.msra.mxu0 0.0
    %1037 = vmatpush.msra.mxu0 0.0
    %1038 = vmatpush.msra.mxu0 0.0
    %1039 = vmatpush.msra.mxu0 %v476
    %1040 = vmatmul.f32.gmra.mxu0 %v428
    %v1041 = vpop.f32.mrf.mxu0
    %v1042 = vadd.f32 %v170, %v1041
    %1043 = vdwg.mxu0
    %1044 = vmatpush.msra.mxu0 0.0
    %1045 = vmatpush.msra.mxu0 0.0
    %1046 = vmatpush.msra.mxu0 0.0
    %1047 = vmatpush.msra.mxu0 0.0
    %1048 = vmatpush.msra.mxu0 0.0
    %1049 = vmatpush.msra.mxu0 0.0
    %1050 = vmatpush.msra.mxu0 0.0
    %1051 = vmatpush.msra.mxu0 0.0
    %1052 = vmatpush.msra.mxu0 0.0
    %1053 = vmatpush.msra.mxu0 0.0
    %1054 = vmatpush.msra.mxu0 0.0
    %1055 = vmatpush.msra.mxu0 0.0
    %1056 = vmatpush.msra.mxu0 0.0
    %1057 = vmatpush.msra.mxu0 0.0
    %1058 = vmatpush.msra.mxu0 0.0
    %1059 = vmatpush.msra.mxu0 %v478
    %1060 = vmatmul.f32.gmra.mxu0 %v428
    %v1061 = vpop.f32.mrf.mxu0
    %v1062 = vadd.f32 %v171, %v1061
    %1063 = vdwg.mxu0
    %1064 = vmatpush.msra.mxu0 0.0
    %1065 = vmatpush.msra.mxu0 0.0
    %1066 = vmatpush.msra.mxu0 0.0
    %1067 = vmatpush.msra.mxu0 0.0
    %1068 = vmatpush.msra.mxu0 0.0
    %1069 = vmatpush.msra.mxu0 0.0
    %1070 = vmatpush.msra.mxu0 0.0
    %1071 = vmatpush.msra.mxu0 0.0
    %1072 = vmatpush.msra.mxu0 0.0
    %1073 = vmatpush.msra.mxu0 0.0
    %1074 = vmatpush.msra.mxu0 0.0
    %1075 = vmatpush.msra.mxu0 0.0
    %1076 = vmatpush.msra.mxu0 0.0
    %1077 = vmatpush.msra.mxu0 0.0
    %1078 = vmatpush.msra.mxu0 0.0
    %1079 = vmatpush.msra.mxu0 %v480
    %1080 = vmatmul.f32.gmra.mxu0 %v428
    %v1081 = vpop.f32.mrf.mxu0
    %v1082 = vadd.f32 %v172, %v1081
    %1083 = vdwg.mxu0
    %1084 = vmatpush.msra.mxu0 0.0
    %1085 = vmatpush.msra.mxu0 0.0
    %1086 = vmatpush.msra.mxu0 0.0
    %1087 = vmatpush.msra.mxu0 0.0
    %1088 = vmatpush.msra.mxu0 0.0
    %1089 = vmatpush.msra.mxu0 0.0
    %1090 = vmatpush.msra.mxu0 0.0
    %1091 = vmatpush.msra.mxu0 0.0
    %1092 = vmatpush.msra.mxu0 0.0
    %1093 = vmatpush.msra.mxu0 0.0
    %1094 = vmatpush.msra.mxu0 0.0
    %1095 = vmatpush.msra.mxu0 0.0
    %1096 = vmatpush.msra.mxu0 0.0
    %1097 = vmatpush.msra.mxu0 0.0
    %1098 = vmatpush.msra.mxu0 0.0
    %1099 = vmatpush.msra.mxu0 %v482
    %1100 = vmatmul.f32.gmra.mxu0 %v428
    %v1101 = vpop.f32.mrf.mxu0
    %v1102 = vadd.f32 %v173, %v1101
    %1103 = vdwg.mxu0
    %1104 = vmatpush.msra.mxu0 0.0
    %1105 = vmatpush.msra.mxu0 0.0
    %1106 = vmatpush.msra.mxu0 0.0
    %1107 = vmatpush.msra.mxu0 0.0
    %1108 = vmatpush.msra.mxu0 0.0
    %1109 = vmatpush.msra.mxu0 0.0
    %1110 = vmatpush.msra.mxu0 0.0
    %1111 = vmatpush.msra.mxu0 0.0
    %1112 = vmatpush.msra.mxu0 0.0
    %1113 = vmatpush.msra.mxu0 0.0
    %1114 = vmatpush.msra.mxu0 0.0
    %1115 = vmatpush.msra.mxu0 0.0
    %1116 = vmatpush.msra.mxu0 0.0
    %1117 = vmatpush.msra.mxu0 0.0
    %1118 = vmatpush.msra.mxu0 0.0
    %1119 = vmatpush.msra.mxu0 %v484
    %1120 = vmatmul.f32.gmra.mxu0 %v428
    %v1121 = vpop.f32.mrf.mxu0
    %v1122 = vadd.f32 %v174, %v1121
    %1123 = vdwg.mxu0
    %1124 = vmatpush.msra.mxu0 0.0
    %1125 = vmatpush.msra.mxu0 0.0
    %1126 = vmatpush.msra.mxu0 0.0
    %1127 = vmatpush.msra.mxu0 0.0
    %1128 = vmatpush.msra.mxu0 0.0
    %1129 = vmatpush.msra.mxu0 0.0
    %1130 = vmatpush.msra.mxu0 0.0
    %1131 = vmatpush.msra.mxu0 0.0
    %1132 = vmatpush.msra.mxu0 0.0
    %1133 = vmatpush.msra.mxu0 0.0
    %1134 = vmatpush.msra.mxu0 0.0
    %1135 = vmatpush.msra.mxu0 0.0
    %1136 = vmatpush.msra.mxu0 0.0
    %1137 = vmatpush.msra.mxu0 0.0
    %1138 = vmatpush.msra.mxu0 0.0
    %1139 = vmatpush.msra.mxu0 %v486
    %1140 = vmatmul.f32.gmra.mxu0 %v428
    %v1141 = vpop.f32.mrf.mxu0
    %v1142 = vadd.f32 %v175, %v1141
    %1143 = vdwg.mxu0
    %1144 = vmatpush.msra.mxu0 0.0
    %1145 = vmatpush.msra.mxu0 0.0
    %1146 = vmatpush.msra.mxu0 0.0
    %1147 = vmatpush.msra.mxu0 0.0
    %1148 = vmatpush.msra.mxu0 0.0
    %1149 = vmatpush.msra.mxu0 0.0
    %1150 = vmatpush.msra.mxu0 0.0
    %1151 = vmatpush.msra.mxu0 0.0
    %1152 = vmatpush.msra.mxu0 0.0
    %1153 = vmatpush.msra.mxu0 0.0
    %1154 = vmatpush.msra.mxu0 0.0
    %1155 = vmatpush.msra.mxu0 0.0
    %1156 = vmatpush.msra.mxu0 0.0
    %1157 = vmatpush.msra.mxu0 0.0
    %1158 = vmatpush.msra.mxu0 0.0
    %1159 = vmatpush.msra.mxu0 %v488
    %1160 = vmatmul.f32.gmra.mxu0 %v428
    %v1161 = vpop.f32.mrf.mxu0
    %v1162 = vadd.f32 %v176, %v1161
    %1163 = vdwg.mxu0
    %1164 = vmatpush.msra.mxu0 0.0
    %1165 = vmatpush.msra.mxu0 0.0
    %1166 = vmatpush.msra.mxu0 0.0
    %1167 = vmatpush.msra.mxu0 0.0
    %1168 = vmatpush.msra.mxu0 0.0
    %1169 = vmatpush.msra.mxu0 0.0
    %1170 = vmatpush.msra.mxu0 0.0
    %1171 = vmatpush.msra.mxu0 0.0
    %1172 = vmatpush.msra.mxu0 0.0
    %1173 = vmatpush.msra.mxu0 0.0
    %1174 = vmatpush.msra.mxu0 0.0
    %1175 = vmatpush.msra.mxu0 0.0
    %1176 = vmatpush.msra.mxu0 0.0
    %1177 = vmatpush.msra.mxu0 0.0
    %1178 = vmatpush.msra.mxu0 0.0
    %1179 = vmatpush.msra.mxu0 %v490
    %1180 = vmatmul.f32.gmra.mxu0 %v428
    %v1181 = vpop.f32.mrf.mxu0
    %v1182 = vadd.f32 %v177, %v1181
    %1183 = vdwg.mxu0
    %1184 = vmatpush.msra.mxu0 0.0
    %1185 = vmatpush.msra.mxu0 0.0
    %1186 = vmatpush.msra.mxu0 0.0
    %1187 = vmatpush.msra.mxu0 0.0
    %1188 = vmatpush.msra.mxu0 0.0
    %1189 = vmatpush.msra.mxu0 0.0
    %1190 = vmatpush.msra.mxu0 0.0
    %1191 = vmatpush.msra.mxu0 0.0
    %1192 = vmatpush.msra.mxu0 0.0
    %1193 = vmatpush.msra.mxu0 0.0
    %1194 = vmatpush.msra.mxu0 0.0
    %1195 = vmatpush.msra.mxu0 0.0
    %1196 = vmatpush.msra.mxu0 0.0
    %1197 = vmatpush.msra.mxu0 0.0
    %1198 = vmatpush.msra.mxu0 0.0
    %1199 = vmatpush.msra.mxu0 %v492
    %1200 = vmatmul.f32.gmra.mxu0 %v428
    %v1201 = vpop.f32.mrf.mxu0
    %v1202 = vadd.f32 %v178, %v1201
    %1203 = vdwg.mxu0
    %1204 = vmatpush.msra.mxu0 0.0
    %1205 = vmatpush.msra.mxu0 0.0
    %1206 = vmatpush.msra.mxu0 0.0
    %1207 = vmatpush.msra.mxu0 0.0
    %1208 = vmatpush.msra.mxu0 0.0
    %1209 = vmatpush.msra.mxu0 0.0
    %1210 = vmatpush.msra.mxu0 0.0
    %1211 = vmatpush.msra.mxu0 0.0
    %1212 = vmatpush.msra.mxu0 0.0
    %1213 = vmatpush.msra.mxu0 0.0
    %1214 = vmatpush.msra.mxu0 0.0
    %1215 = vmatpush.msra.mxu0 0.0
    %1216 = vmatpush.msra.mxu0 0.0
    %1217 = vmatpush.msra.mxu0 0.0
    %1218 = vmatpush.msra.mxu0 0.0
    %1219 = vmatpush.msra.mxu0 %v494
    %1220 = vmatmul.f32.gmra.mxu0 %v428
    %v1221 = vpop.f32.mrf.mxu0
    %v1222 = vadd.f32 %v179, %v1221
    %1223 = vdwg.mxu0
    %1224 = vmatpush.msra.mxu0 0.0
    %1225 = vmatpush.msra.mxu0 0.0
    %1226 = vmatpush.msra.mxu0 0.0
    %1227 = vmatpush.msra.mxu0 0.0
    %1228 = vmatpush.msra.mxu0 0.0
    %1229 = vmatpush.msra.mxu0 0.0
    %1230 = vmatpush.msra.mxu0 0.0
    %1231 = vmatpush.msra.mxu0 0.0
    %1232 = vmatpush.msra.mxu0 0.0
    %1233 = vmatpush.msra.mxu0 0.0
    %1234 = vmatpush.msra.mxu0 0.0
    %1235 = vmatpush.msra.mxu0 0.0
    %1236 = vmatpush.msra.mxu0 0.0
    %1237 = vmatpush.msra.mxu0 0.0
    %1238 = vmatpush.msra.mxu0 0.0
    %1239 = vmatpush.msra.mxu0 %v496
    %1240 = vmatmul.f32.gmra.mxu0 %v428
    %v1241 = vpop.f32.mrf.mxu0
    %v1242 = vadd.f32 %v180, %v1241
    %1243 = vdwg.mxu0
    %1244 = vmatpush.msra.mxu0 0.0
    %1245 = vmatpush.msra.mxu0 0.0
    %1246 = vmatpush.msra.mxu0 0.0
    %1247 = vmatpush.msra.mxu0 0.0
    %1248 = vmatpush.msra.mxu0 0.0
    %1249 = vmatpush.msra.mxu0 0.0
    %1250 = vmatpush.msra.mxu0 0.0
    %1251 = vmatpush.msra.mxu0 0.0
    %1252 = vmatpush.msra.mxu0 0.0
    %1253 = vmatpush.msra.mxu0 0.0
    %1254 = vmatpush.msra.mxu0 0.0
    %1255 = vmatpush.msra.mxu0 0.0
    %1256 = vmatpush.msra.mxu0 0.0
    %1257 = vmatpush.msra.mxu0 0.0
    %1258 = vmatpush.msra.mxu0 0.0
    %1259 = vmatpush.msra.mxu0 %v498
    %1260 = vmatmul.f32.gmra.mxu0 %v428
    %v1261 = vpop.f32.mrf.mxu0
    %v1262 = vadd.f32 %v181, %v1261
    %1263 = vdwg.mxu0
    %1264 = vmatpush.msra.mxu0 0.0
    %1265 = vmatpush.msra.mxu0 0.0
    %1266 = vmatpush.msra.mxu0 0.0
    %1267 = vmatpush.msra.mxu0 0.0
    %1268 = vmatpush.msra.mxu0 0.0
    %1269 = vmatpush.msra.mxu0 0.0
    %1270 = vmatpush.msra.mxu0 0.0
    %1271 = vmatpush.msra.mxu0 0.0
    %1272 = vmatpush.msra.mxu0 0.0
    %1273 = vmatpush.msra.mxu0 0.0
    %1274 = vmatpush.msra.mxu0 0.0
    %1275 = vmatpush.msra.mxu0 0.0
    %1276 = vmatpush.msra.mxu0 0.0
    %1277 = vmatpush.msra.mxu0 0.0
    %1278 = vmatpush.msra.mxu0 0.0
    %1279 = vmatpush.msra.mxu0 %v500
    %1280 = vmatmul.f32.gmra.mxu0 %v428
    %v1281 = vpop.f32.mrf.mxu0
    %v1282 = vadd.f32 %v182, %v1281
    %1283 = vdwg.mxu0
    %1284 = vmatpush.msra.mxu0 0.0
    %1285 = vmatpush.msra.mxu0 0.0
    %1286 = vmatpush.msra.mxu0 0.0
    %1287 = vmatpush.msra.mxu0 0.0
    %1288 = vmatpush.msra.mxu0 0.0
    %1289 = vmatpush.msra.mxu0 0.0
    %1290 = vmatpush.msra.mxu0 0.0
    %1291 = vmatpush.msra.mxu0 0.0
    %1292 = vmatpush.msra.mxu0 0.0
    %1293 = vmatpush.msra.mxu0 0.0
    %1294 = vmatpush.msra.mxu0 0.0
    %1295 = vmatpush.msra.mxu0 0.0
    %1296 = vmatpush.msra.mxu0 0.0
    %1297 = vmatpush.msra.mxu0 0.0
    %1298 = vmatpush.msra.mxu0 0.0
    %1299 = vmatpush.msra.mxu0 %v502
    %1300 = vmatmul.f32.gmra.mxu0 %v428
    %v1301 = vpop.f32.mrf.mxu0
    %v1302 = vadd.f32 %v183, %v1301
    %1303 = vdwg.mxu0
    %1304 = vmatpush.msra.mxu0 0.0
    %1305 = vmatpush.msra.mxu0 0.0
    %1306 = vmatpush.msra.mxu0 0.0
    %1307 = vmatpush.msra.mxu0 0.0
    %1308 = vmatpush.msra.mxu0 0.0
    %1309 = vmatpush.msra.mxu0 0.0
    %1310 = vmatpush.msra.mxu0 0.0
    %1311 = vmatpush.msra.mxu0 0.0
    %1312 = vmatpush.msra.mxu0 0.0
    %1313 = vmatpush.msra.mxu0 0.0
    %1314 = vmatpush.msra.mxu0 0.0
    %1315 = vmatpush.msra.mxu0 0.0
    %1316 = vmatpush.msra.mxu0 0.0
    %1317 = vmatpush.msra.mxu0 0.0
    %1318 = vmatpush.msra.mxu0 0.0
    %1319 = vmatpush.msra.mxu0 %v504
    %1320 = vmatmul.f32.gmra.mxu0 %v428
    %v1321 = vpop.f32.mrf.mxu0
    %v1322 = vadd.f32 %v184, %v1321
    %1323 = vdwg.mxu0
    %1324 = vmatpush.msra.mxu0 0.0
    %1325 = vmatpush.msra.mxu0 0.0
    %1326 = vmatpush.msra.mxu0 0.0
    %1327 = vmatpush.msra.mxu0 0.0
    %1328 = vmatpush.msra.mxu0 0.0
    %1329 = vmatpush.msra.mxu0 0.0
    %1330 = vmatpush.msra.mxu0 0.0
    %1331 = vmatpush.msra.mxu0 0.0
    %1332 = vmatpush.msra.mxu0 0.0
    %1333 = vmatpush.msra.mxu0 0.0
    %1334 = vmatpush.msra.mxu0 0.0
    %1335 = vmatpush.msra.mxu0 0.0
    %1336 = vmatpush.msra.mxu0 0.0
    %1337 = vmatpush.msra.mxu0 0.0
    %1338 = vmatpush.msra.mxu0 0.0
    %1339 = vmatpush.msra.mxu0 %v506
    %1340 = vmatmul.f32.gmra.mxu0 %v428
    %v1341 = vpop.f32.mrf.mxu0
    %v1342 = vadd.f32 %v185, %v1341
    %1343 = vdwg.mxu0
    %1344 = vmatpush.msra.mxu0 0.0
    %1345 = vmatpush.msra.mxu0 0.0
    %1346 = vmatpush.msra.mxu0 0.0
    %1347 = vmatpush.msra.mxu0 0.0
    %1348 = vmatpush.msra.mxu0 0.0
    %1349 = vmatpush.msra.mxu0 0.0
    %1350 = vmatpush.msra.mxu0 0.0
    %1351 = vmatpush.msra.mxu0 0.0
    %1352 = vmatpush.msra.mxu0 0.0
    %1353 = vmatpush.msra.mxu0 0.0
    %1354 = vmatpush.msra.mxu0 0.0
    %1355 = vmatpush.msra.mxu0 0.0
    %1356 = vmatpush.msra.mxu0 0.0
    %1357 = vmatpush.msra.mxu0 0.0
    %1358 = vmatpush.msra.mxu0 0.0
    %1359 = vmatpush.msra.mxu0 %v508
    %1360 = vmatmul.f32.gmra.mxu0 %v428
    %v1361 = vpop.f32.mrf.mxu0
    %v1362 = vadd.f32 %v186, %v1361
    %1363 = vdwg.mxu0
    %1364 = vmatpush.msra.mxu0 0.0
    %1365 = vmatpush.msra.mxu0 0.0
    %1366 = vmatpush.msra.mxu0 0.0
    %1367 = vmatpush.msra.mxu0 0.0
    %1368 = vmatpush.msra.mxu0 0.0
    %1369 = vmatpush.msra.mxu0 0.0
    %1370 = vmatpush.msra.mxu0 0.0
    %1371 = vmatpush.msra.mxu0 0.0
    %1372 = vmatpush.msra.mxu0 0.0
    %1373 = vmatpush.msra.mxu0 0.0
    %1374 = vmatpush.msra.mxu0 0.0
    %1375 = vmatpush.msra.mxu0 0.0
    %1376 = vmatpush.msra.mxu0 0.0
    %1377 = vmatpush.msra.mxu0 0.0
    %1378 = vmatpush.msra.mxu0 0.0
    %1379 = vmatpush.msra.mxu0 %v510
    %1380 = vmatmul.f32.gmra.mxu0 %v428
    %v1381 = vpop.f32.mrf.mxu0
    %v1382 = vadd.f32 %v187, %v1381
    %1383 = vdwg.mxu0
    %1384 = vmatpush.msra.mxu0 0.0
    %1385 = vmatpush.msra.mxu0 0.0
    %1386 = vmatpush.msra.mxu0 0.0
    %1387 = vmatpush.msra.mxu0 0.0
    %1388 = vmatpush.msra.mxu0 0.0
    %1389 = vmatpush.msra.mxu0 0.0
    %1390 = vmatpush.msra.mxu0 0.0
    %1391 = vmatpush.msra.mxu0 0.0
    %1392 = vmatpush.msra.mxu0 0.0
    %1393 = vmatpush.msra.mxu0 0.0
    %1394 = vmatpush.msra.mxu0 0.0
    %1395 = vmatpush.msra.mxu0 0.0
    %1396 = vmatpush.msra.mxu0 0.0
    %1397 = vmatpush.msra.mxu0 0.0
    %1398 = vmatpush.msra.mxu0 0.0
    %1399 = vmatpush.msra.mxu0 %v512
    %1400 = vmatmul.f32.gmra.mxu0 %v428
    %v1401 = vpop.f32.mrf.mxu0
    %v1402 = vadd.f32 %v188, %v1401
    %1403 = vdwg.mxu0
    %1404 = vmatpush.msra.mxu0 0.0
    %1405 = vmatpush.msra.mxu0 0.0
    %1406 = vmatpush.msra.mxu0 0.0
    %1407 = vmatpush.msra.mxu0 0.0
    %1408 = vmatpush.msra.mxu0 0.0
    %1409 = vmatpush.msra.mxu0 0.0
    %1410 = vmatpush.msra.mxu0 0.0
    %1411 = vmatpush.msra.mxu0 0.0
    %1412 = vmatpush.msra.mxu0 0.0
    %1413 = vmatpush.msra.mxu0 0.0
    %1414 = vmatpush.msra.mxu0 0.0
    %1415 = vmatpush.msra.mxu0 0.0
    %1416 = vmatpush.msra.mxu0 0.0
    %1417 = vmatpush.msra.mxu0 0.0
    %1418 = vmatpush.msra.mxu0 0.0
    %1419 = vmatpush.msra.mxu0 %v514
    %1420 = vmatmul.f32.gmra.mxu0 %v428
    %v1421 = vpop.f32.mrf.mxu0
    %v1422 = vadd.f32 %v189, %v1421
    %1423 = vdwg.mxu0
    %1424 = vmatpush.msra.mxu0 0.0
    %1425 = vmatpush.msra.mxu0 0.0
    %1426 = vmatpush.msra.mxu0 0.0
    %1427 = vmatpush.msra.mxu0 0.0
    %1428 = vmatpush.msra.mxu0 0.0
    %1429 = vmatpush.msra.mxu0 0.0
    %1430 = vmatpush.msra.mxu0 0.0
    %1431 = vmatpush.msra.mxu0 0.0
    %1432 = vmatpush.msra.mxu0 0.0
    %1433 = vmatpush.msra.mxu0 0.0
    %1434 = vmatpush.msra.mxu0 0.0
    %1435 = vmatpush.msra.mxu0 0.0
    %1436 = vmatpush.msra.mxu0 0.0
    %1437 = vmatpush.msra.mxu0 0.0
    %1438 = vmatpush.msra.mxu0 0.0
    %1439 = vmatpush.msra.mxu0 %v516
    %1440 = vmatmul.f32.gmra.mxu0 %v428
    %v1441 = vpop.f32.mrf.mxu0
    %v1442 = vadd.f32 %v190, %v1441
    %1443 = vdwg.mxu0
    %1444 = vmatpush.msra.mxu0 0.0
    %1445 = vmatpush.msra.mxu0 0.0
    %1446 = vmatpush.msra.mxu0 0.0
    %1447 = vmatpush.msra.mxu0 0.0
    %1448 = vmatpush.msra.mxu0 0.0
    %1449 = vmatpush.msra.mxu0 0.0
    %1450 = vmatpush.msra.mxu0 0.0
    %1451 = vmatpush.msra.mxu0 0.0
    %1452 = vmatpush.msra.mxu0 0.0
    %1453 = vmatpush.msra.mxu0 0.0
    %1454 = vmatpush.msra.mxu0 0.0
    %1455 = vmatpush.msra.mxu0 0.0
    %1456 = vmatpush.msra.mxu0 0.0
    %1457 = vmatpush.msra.mxu0 0.0
    %1458 = vmatpush.msra.mxu0 0.0
    %1459 = vmatpush.msra.mxu0 %v518
    %1460 = vmatmul.f32.gmra.mxu0 %v428
    %v1461 = vpop.f32.mrf.mxu0
    %v1462 = vadd.f32 %v191, %v1461
    %1463 = vdwg.mxu0
    %1464 = vmatpush.msra.mxu0 0.0
    %1465 = vmatpush.msra.mxu0 0.0
    %1466 = vmatpush.msra.mxu0 0.0
    %1467 = vmatpush.msra.mxu0 0.0
    %1468 = vmatpush.msra.mxu0 0.0
    %1469 = vmatpush.msra.mxu0 0.0
    %1470 = vmatpush.msra.mxu0 0.0
    %1471 = vmatpush.msra.mxu0 0.0
    %1472 = vmatpush.msra.mxu0 0.0
    %1473 = vmatpush.msra.mxu0 0.0
    %1474 = vmatpush.msra.mxu0 0.0
    %1475 = vmatpush.msra.mxu0 0.0
    %1476 = vmatpush.msra.mxu0 0.0
    %1477 = vmatpush.msra.mxu0 0.0
    %1478 = vmatpush.msra.mxu0 0.0
    %1479 = vmatpush.msra.mxu0 %v520
    %1480 = vmatmul.f32.gmra.mxu0 %v428
    %v1481 = vpop.f32.mrf.mxu0
    %v1482 = vadd.f32 %v192, %v1481
    %1483 = vdwg.mxu0
    %1484 = vmatpush.msra.mxu0 0.0
    %1485 = vmatpush.msra.mxu0 0.0
    %1486 = vmatpush.msra.mxu0 0.0
    %1487 = vmatpush.msra.mxu0 0.0
    %1488 = vmatpush.msra.mxu0 0.0
    %1489 = vmatpush.msra.mxu0 0.0
    %1490 = vmatpush.msra.mxu0 0.0
    %1491 = vmatpush.msra.mxu0 0.0
    %1492 = vmatpush.msra.mxu0 0.0
    %1493 = vmatpush.msra.mxu0 0.0
    %1494 = vmatpush.msra.mxu0 0.0
    %1495 = vmatpush.msra.mxu0 0.0
    %1496 = vmatpush.msra.mxu0 0.0
    %1497 = vmatpush.msra.mxu0 0.0
    %1498 = vmatpush.msra.mxu0 0.0
    %1499 = vmatpush.msra.mxu0 %v522
    %1500 = vmatmul.f32.gmra.mxu0 %v428
    %v1501 = vpop.f32.mrf.mxu0
    %v1502 = vadd.f32 %v193, %v1501
    %1503 = vdwg.mxu0
    %1504 = vmatpush.msra.mxu0 0.0
    %1505 = vmatpush.msra.mxu0 0.0
    %1506 = vmatpush.msra.mxu0 0.0
    %1507 = vmatpush.msra.mxu0 0.0
    %1508 = vmatpush.msra.mxu0 0.0
    %1509 = vmatpush.msra.mxu0 0.0
    %1510 = vmatpush.msra.mxu0 0.0
    %1511 = vmatpush.msra.mxu0 0.0
    %1512 = vmatpush.msra.mxu0 0.0
    %1513 = vmatpush.msra.mxu0 0.0
    %1514 = vmatpush.msra.mxu0 0.0
    %1515 = vmatpush.msra.mxu0 0.0
    %1516 = vmatpush.msra.mxu0 0.0
    %1517 = vmatpush.msra.mxu0 0.0
    %1518 = vmatpush.msra.mxu0 0.0
    %1519 = vmatpush.msra.mxu0 %v524
    %1520 = vmatmul.f32.gmra.mxu0 %v428
    %v1521 = vpop.f32.mrf.mxu0
    %v1522 = vadd.f32 %v194, %v1521
    %1523 = vdwg.mxu0
    %1524 = vmatpush.msra.mxu0 0.0
    %1525 = vmatpush.msra.mxu0 0.0
    %1526 = vmatpush.msra.mxu0 0.0
    %1527 = vmatpush.msra.mxu0 0.0
    %1528 = vmatpush.msra.mxu0 0.0
    %1529 = vmatpush.msra.mxu0 0.0
    %1530 = vmatpush.msra.mxu0 0.0
    %1531 = vmatpush.msra.mxu0 0.0
    %1532 = vmatpush.msra.mxu0 0.0
    %1533 = vmatpush.msra.mxu0 0.0
    %1534 = vmatpush.msra.mxu0 0.0
    %1535 = vmatpush.msra.mxu0 0.0
    %1536 = vmatpush.msra.mxu0 0.0
    %1537 = vmatpush.msra.mxu0 0.0
    %1538 = vmatpush.msra.mxu0 0.0
    %1539 = vmatpush.msra.mxu0 %v526
    %1540 = vmatmul.f32.gmra.mxu0 %v428
    %v1541 = vpop.f32.mrf.mxu0
    %v1542 = vadd.f32 %v195, %v1541
    %1543 = vdwg.mxu0
    %1544 = vmatpush.msra.mxu0 0.0
    %1545 = vmatpush.msra.mxu0 0.0
    %1546 = vmatpush.msra.mxu0 0.0
    %1547 = vmatpush.msra.mxu0 0.0
    %1548 = vmatpush.msra.mxu0 0.0
    %1549 = vmatpush.msra.mxu0 0.0
    %1550 = vmatpush.msra.mxu0 0.0
    %1551 = vmatpush.msra.mxu0 0.0
    %1552 = vmatpush.msra.mxu0 0.0
    %1553 = vmatpush.msra.mxu0 0.0
    %1554 = vmatpush.msra.mxu0 0.0
    %1555 = vmatpush.msra.mxu0 0.0
    %1556 = vmatpush.msra.mxu0 0.0
    %1557 = vmatpush.msra.mxu0 0.0
    %1558 = vmatpush.msra.mxu0 0.0
    %1559 = vmatpush.msra.mxu0 %v528
    %1560 = vmatmul.f32.gmra.mxu0 %v428
    %v1561 = vpop.f32.mrf.mxu0
    %v1562 = vadd.f32 %v196, %v1561
    %1563 = vdwg.mxu0
    %1564 = vmatpush.msra.mxu0 0.0
    %1565 = vmatpush.msra.mxu0 0.0
    %1566 = vmatpush.msra.mxu0 0.0
    %1567 = vmatpush.msra.mxu0 0.0
    %1568 = vmatpush.msra.mxu0 0.0
    %1569 = vmatpush.msra.mxu0 0.0
    %1570 = vmatpush.msra.mxu0 0.0
    %1571 = vmatpush.msra.mxu0 0.0
    %1572 = vmatpush.msra.mxu0 0.0
    %1573 = vmatpush.msra.mxu0 0.0
    %1574 = vmatpush.msra.mxu0 0.0
    %1575 = vmatpush.msra.mxu0 0.0
    %1576 = vmatpush.msra.mxu0 0.0
    %1577 = vmatpush.msra.mxu0 0.0
    %1578 = vmatpush.msra.mxu0 0.0
    %1579 = vmatpush.msra.mxu0 %v530
    %1580 = vmatmul.f32.gmra.mxu0 %v428
    %v1581 = vpop.f32.mrf.mxu0
    %v1582 = vadd.f32 %v197, %v1581
    %1583 = vdwg.mxu0
    %1584 = vmatpush.msra.mxu0 0.0
    %1585 = vmatpush.msra.mxu0 0.0
    %1586 = vmatpush.msra.mxu0 0.0
    %1587 = vmatpush.msra.mxu0 0.0
    %1588 = vmatpush.msra.mxu0 0.0
    %1589 = vmatpush.msra.mxu0 0.0
    %1590 = vmatpush.msra.mxu0 0.0
    %1591 = vmatpush.msra.mxu0 0.0
    %1592 = vmatpush.msra.mxu0 0.0
    %1593 = vmatpush.msra.mxu0 0.0
    %1594 = vmatpush.msra.mxu0 0.0
    %1595 = vmatpush.msra.mxu0 0.0
    %1596 = vmatpush.msra.mxu0 0.0
    %1597 = vmatpush.msra.mxu0 0.0
    %1598 = vmatpush.msra.mxu0 0.0
    %1599 = vmatpush.msra.mxu0 %v532
    %1600 = vmatmul.f32.gmra.mxu0 %v428
    %v1601 = vpop.f32.mrf.mxu0
    %v1602 = vadd.f32 %v198, %v1601
    %1603 = vdwg.mxu0
    %1604 = vmatpush.msra.mxu0 0.0
    %1605 = vmatpush.msra.mxu0 0.0
    %1606 = vmatpush.msra.mxu0 0.0
    %1607 = vmatpush.msra.mxu0 0.0
    %1608 = vmatpush.msra.mxu0 0.0
    %1609 = vmatpush.msra.mxu0 0.0
    %1610 = vmatpush.msra.mxu0 0.0
    %1611 = vmatpush.msra.mxu0 0.0
    %1612 = vmatpush.msra.mxu0 0.0
    %1613 = vmatpush.msra.mxu0 0.0
    %1614 = vmatpush.msra.mxu0 0.0
    %1615 = vmatpush.msra.mxu0 0.0
    %1616 = vmatpush.msra.mxu0 0.0
    %1617 = vmatpush.msra.mxu0 0.0
    %1618 = vmatpush.msra.mxu0 0.0
    %1619 = vmatpush.msra.mxu0 %v534
    %1620 = vmatmul.f32.gmra.mxu0 %v428
    %v1621 = vpop.f32.mrf.mxu0
    %v1622 = vadd.f32 %v199, %v1621
    %1623 = vdwg.mxu0
    %1624 = vmatpush.msra.mxu0 0.0
    %1625 = vmatpush.msra.mxu0 0.0
    %1626 = vmatpush.msra.mxu0 0.0
    %1627 = vmatpush.msra.mxu0 0.0
    %1628 = vmatpush.msra.mxu0 0.0
    %1629 = vmatpush.msra.mxu0 0.0
    %1630 = vmatpush.msra.mxu0 0.0
    %1631 = vmatpush.msra.mxu0 0.0
    %1632 = vmatpush.msra.mxu0 0.0
    %1633 = vmatpush.msra.mxu0 0.0
    %1634 = vmatpush.msra.mxu0 0.0
    %1635 = vmatpush.msra.mxu0 0.0
    %1636 = vmatpush.msra.mxu0 0.0
    %1637 = vmatpush.msra.mxu0 0.0
    %1638 = vmatpush.msra.mxu0 0.0
    %1639 = vmatpush.msra.mxu0 %v536
    %1640 = vmatmul.f32.gmra.mxu0 %v428
    %v1641 = vpop.f32.mrf.mxu0
    %v1642 = vadd.f32 %v200, %v1641
    %1643 = vdwg.mxu0
    %1644 = vmatpush.msra.mxu0 0.0
    %1645 = vmatpush.msra.mxu0 0.0
    %1646 = vmatpush.msra.mxu0 0.0
    %1647 = vmatpush.msra.mxu0 0.0
    %1648 = vmatpush.msra.mxu0 0.0
    %1649 = vmatpush.msra.mxu0 0.0
    %1650 = vmatpush.msra.mxu0 0.0
    %1651 = vmatpush.msra.mxu0 0.0
    %1652 = vmatpush.msra.mxu0 0.0
    %1653 = vmatpush.msra.mxu0 0.0
    %1654 = vmatpush.msra.mxu0 0.0
    %1655 = vmatpush.msra.mxu0 0.0
    %1656 = vmatpush.msra.mxu0 0.0
    %1657 = vmatpush.msra.mxu0 0.0
    %1658 = vmatpush.msra.mxu0 0.0
    %1659 = vmatpush.msra.mxu0 %v538
    %1660 = vmatmul.f32.gmra.mxu0 %v428
    %v1661 = vpop.f32.mrf.mxu0
    %v1662 = vadd.f32 %v201, %v1661
    %1663 = vdwg.mxu0
    %1664 = vmatpush.msra.mxu0 0.0
    %1665 = vmatpush.msra.mxu0 0.0
    %1666 = vmatpush.msra.mxu0 0.0
    %1667 = vmatpush.msra.mxu0 0.0
    %1668 = vmatpush.msra.mxu0 0.0
    %1669 = vmatpush.msra.mxu0 0.0
    %1670 = vmatpush.msra.mxu0 0.0
    %1671 = vmatpush.msra.mxu0 0.0
    %1672 = vmatpush.msra.mxu0 0.0
    %1673 = vmatpush.msra.mxu0 0.0
    %1674 = vmatpush.msra.mxu0 0.0
    %1675 = vmatpush.msra.mxu0 0.0
    %1676 = vmatpush.msra.mxu0 0.0
    %1677 = vmatpush.msra.mxu0 0.0
    %1678 = vmatpush.msra.mxu0 0.0
    %1679 = vmatpush.msra.mxu0 %v540
    %1680 = vmatmul.f32.gmra.mxu0 %v428
    %v1681 = vpop.f32.mrf.mxu0
    %v1682 = vadd.f32 %v202, %v1681
    %1683 = vdwg.mxu0
    %1684 = vmatpush.msra.mxu0 0.0
    %1685 = vmatpush.msra.mxu0 0.0
    %1686 = vmatpush.msra.mxu0 0.0
    %1687 = vmatpush.msra.mxu0 0.0
    %1688 = vmatpush.msra.mxu0 0.0
    %1689 = vmatpush.msra.mxu0 0.0
    %1690 = vmatpush.msra.mxu0 0.0
    %1691 = vmatpush.msra.mxu0 0.0
    %1692 = vmatpush.msra.mxu0 0.0
    %1693 = vmatpush.msra.mxu0 0.0
    %1694 = vmatpush.msra.mxu0 0.0
    %1695 = vmatpush.msra.mxu0 0.0
    %1696 = vmatpush.msra.mxu0 0.0
    %1697 = vmatpush.msra.mxu0 0.0
    %1698 = vmatpush.msra.mxu0 0.0
    %1699 = vmatpush.msra.mxu0 %v542
    %1700 = vmatmul.f32.gmra.mxu0 %v428
    %v1701 = vpop.f32.mrf.mxu0
    %v1702 = vadd.f32 %v203, %v1701
    %1703 = vdwg.mxu0
    %1704 = vmatpush.msra.mxu0 0.0
    %1705 = vmatpush.msra.mxu0 0.0
    %1706 = vmatpush.msra.mxu0 0.0
    %1707 = vmatpush.msra.mxu0 0.0
    %1708 = vmatpush.msra.mxu0 0.0
    %1709 = vmatpush.msra.mxu0 0.0
    %1710 = vmatpush.msra.mxu0 0.0
    %1711 = vmatpush.msra.mxu0 0.0
    %1712 = vmatpush.msra.mxu0 0.0
    %1713 = vmatpush.msra.mxu0 0.0
    %1714 = vmatpush.msra.mxu0 0.0
    %1715 = vmatpush.msra.mxu0 0.0
    %1716 = vmatpush.msra.mxu0 0.0
    %1717 = vmatpush.msra.mxu0 0.0
    %1718 = vmatpush.msra.mxu0 0.0
    %1719 = vmatpush.msra.mxu0 %v544
    %1720 = vmatmul.f32.gmra.mxu0 %v428
    %v1721 = vpop.f32.mrf.mxu0
    %v1722 = vadd.f32 %v204, %v1721
    %1723 = vdwg.mxu0
    %1724 = vmatpush.msra.mxu0 0.0
    %1725 = vmatpush.msra.mxu0 0.0
    %1726 = vmatpush.msra.mxu0 0.0
    %1727 = vmatpush.msra.mxu0 0.0
    %1728 = vmatpush.msra.mxu0 0.0
    %1729 = vmatpush.msra.mxu0 0.0
    %1730 = vmatpush.msra.mxu0 0.0
    %1731 = vmatpush.msra.mxu0 0.0
    %1732 = vmatpush.msra.mxu0 0.0
    %1733 = vmatpush.msra.mxu0 0.0
    %1734 = vmatpush.msra.mxu0 0.0
    %1735 = vmatpush.msra.mxu0 0.0
    %1736 = vmatpush.msra.mxu0 0.0
    %1737 = vmatpush.msra.mxu0 0.0
    %1738 = vmatpush.msra.mxu0 0.0
    %1739 = vmatpush.msra.mxu0 %v546
    %1740 = vmatmul.f32.gmra.mxu0 %v428
    %v1741 = vpop.f32.mrf.mxu0
    %v1742 = vadd.f32 %v205, %v1741
    %1743 = vdwg.mxu0
    %1744 = vmatpush.msra.mxu0 0.0
    %1745 = vmatpush.msra.mxu0 0.0
    %1746 = vmatpush.msra.mxu0 0.0
    %1747 = vmatpush.msra.mxu0 0.0
    %1748 = vmatpush.msra.mxu0 0.0
    %1749 = vmatpush.msra.mxu0 0.0
    %1750 = vmatpush.msra.mxu0 0.0
    %1751 = vmatpush.msra.mxu0 0.0
    %1752 = vmatpush.msra.mxu0 0.0
    %1753 = vmatpush.msra.mxu0 0.0
    %1754 = vmatpush.msra.mxu0 0.0
    %1755 = vmatpush.msra.mxu0 0.0
    %1756 = vmatpush.msra.mxu0 0.0
    %1757 = vmatpush.msra.mxu0 0.0
    %1758 = vmatpush.msra.mxu0 0.0
    %1759 = vmatpush.msra.mxu0 %v548
    %1760 = vmatmul.f32.gmra.mxu0 %v428
    %v1761 = vpop.f32.mrf.mxu0
    %v1762 = vadd.f32 %v206, %v1761
    %1763 = vdwg.mxu0
    %1764 = vmatpush.msra.mxu0 0.0
    %1765 = vmatpush.msra.mxu0 0.0
    %1766 = vmatpush.msra.mxu0 0.0
    %1767 = vmatpush.msra.mxu0 0.0
    %1768 = vmatpush.msra.mxu0 0.0
    %1769 = vmatpush.msra.mxu0 0.0
    %1770 = vmatpush.msra.mxu0 0.0
    %1771 = vmatpush.msra.mxu0 0.0
    %1772 = vmatpush.msra.mxu0 0.0
    %1773 = vmatpush.msra.mxu0 0.0
    %1774 = vmatpush.msra.mxu0 0.0
    %1775 = vmatpush.msra.mxu0 0.0
    %1776 = vmatpush.msra.mxu0 0.0
    %1777 = vmatpush.msra.mxu0 0.0
    %1778 = vmatpush.msra.mxu0 0.0
    %1779 = vmatpush.msra.mxu0 %v550
    %1780 = vmatmul.f32.gmra.mxu0 %v428
    %v1781 = vpop.f32.mrf.mxu0
    %v1782 = vadd.f32 %v207, %v1781
    %1783 = vdwg.mxu0
    %1784 = vmatpush.msra.mxu0 0.0
    %1785 = vmatpush.msra.mxu0 0.0
    %1786 = vmatpush.msra.mxu0 0.0
    %1787 = vmatpush.msra.mxu0 0.0
    %1788 = vmatpush.msra.mxu0 0.0
    %1789 = vmatpush.msra.mxu0 0.0
    %1790 = vmatpush.msra.mxu0 0.0
    %1791 = vmatpush.msra.mxu0 0.0
    %1792 = vmatpush.msra.mxu0 0.0
    %1793 = vmatpush.msra.mxu0 0.0
    %1794 = vmatpush.msra.mxu0 0.0
    %1795 = vmatpush.msra.mxu0 0.0
    %1796 = vmatpush.msra.mxu0 0.0
    %1797 = vmatpush.msra.mxu0 0.0
    %1798 = vmatpush.msra.mxu0 0.0
    %1799 = vmatpush.msra.mxu0 %v552
    %1800 = vmatmul.f32.gmra.mxu0 %v428
    %v1801 = vpop.f32.mrf.mxu0
    %v1802 = vadd.f32 %v208, %v1801
    %1803 = vdwg.mxu0
    %1804 = vmatpush.msra.mxu0 0.0
    %1805 = vmatpush.msra.mxu0 0.0
    %1806 = vmatpush.msra.mxu0 0.0
    %1807 = vmatpush.msra.mxu0 0.0
    %1808 = vmatpush.msra.mxu0 0.0
    %1809 = vmatpush.msra.mxu0 0.0
    %1810 = vmatpush.msra.mxu0 0.0
    %1811 = vmatpush.msra.mxu0 0.0
    %1812 = vmatpush.msra.mxu0 0.0
    %1813 = vmatpush.msra.mxu0 0.0
    %1814 = vmatpush.msra.mxu0 0.0
    %1815 = vmatpush.msra.mxu0 0.0
    %1816 = vmatpush.msra.mxu0 0.0
    %1817 = vmatpush.msra.mxu0 0.0
    %1818 = vmatpush.msra.mxu0 0.0
    %1819 = vmatpush.msra.mxu0 %v554
    %1820 = vmatmul.f32.gmra.mxu0 %v428
    %v1821 = vpop.f32.mrf.mxu0
    %v1822 = vadd.f32 %v209, %v1821
    %1823 = vdwg.mxu0
    %1824 = vmatpush.msra.mxu0 0.0
    %1825 = vmatpush.msra.mxu0 0.0
    %1826 = vmatpush.msra.mxu0 0.0
    %1827 = vmatpush.msra.mxu0 0.0
    %1828 = vmatpush.msra.mxu0 0.0
    %1829 = vmatpush.msra.mxu0 0.0
    %1830 = vmatpush.msra.mxu0 0.0
    %1831 = vmatpush.msra.mxu0 0.0
    %1832 = vmatpush.msra.mxu0 0.0
    %1833 = vmatpush.msra.mxu0 0.0
    %1834 = vmatpush.msra.mxu0 0.0
    %1835 = vmatpush.msra.mxu0 0.0
    %1836 = vmatpush.msra.mxu0 0.0
    %1837 = vmatpush.msra.mxu0 0.0
    %1838 = vmatpush.msra.mxu0 0.0
    %1839 = vmatpush.msra.mxu0 %v556
    %1840 = vmatmul.f32.gmra.mxu0 %v428
    %v1841 = vpop.f32.mrf.mxu0
    %v1842 = vadd.f32 %v210, %v1841
    %1843 = vdwg.mxu0
    %1844 = vmatpush.msra.mxu0 0.0
    %1845 = vmatpush.msra.mxu0 0.0
    %1846 = vmatpush.msra.mxu0 0.0
    %1847 = vmatpush.msra.mxu0 0.0
    %1848 = vmatpush.msra.mxu0 0.0
    %1849 = vmatpush.msra.mxu0 0.0
    %1850 = vmatpush.msra.mxu0 0.0
    %1851 = vmatpush.msra.mxu0 0.0
    %1852 = vmatpush.msra.mxu0 0.0
    %1853 = vmatpush.msra.mxu0 0.0
    %1854 = vmatpush.msra.mxu0 0.0
    %1855 = vmatpush.msra.mxu0 0.0
    %1856 = vmatpush.msra.mxu0 0.0
    %1857 = vmatpush.msra.mxu0 0.0
    %1858 = vmatpush.msra.mxu0 0.0
    %1859 = vmatpush.msra.mxu0 %v558
    %1860 = vmatmul.f32.gmra.mxu0 %v428
    %v1861 = vpop.f32.mrf.mxu0
    %v1862 = vadd.f32 %v211, %v1861
    %1863 = vdwg.mxu0
    %1864 = vmatpush.msra.mxu0 0.0
    %1865 = vmatpush.msra.mxu0 0.0
    %1866 = vmatpush.msra.mxu0 0.0
    %1867 = vmatpush.msra.mxu0 0.0
    %1868 = vmatpush.msra.mxu0 0.0
    %1869 = vmatpush.msra.mxu0 0.0
    %1870 = vmatpush.msra.mxu0 0.0
    %1871 = vmatpush.msra.mxu0 0.0
    %1872 = vmatpush.msra.mxu0 0.0
    %1873 = vmatpush.msra.mxu0 0.0
    %1874 = vmatpush.msra.mxu0 0.0
    %1875 = vmatpush.msra.mxu0 0.0
    %1876 = vmatpush.msra.mxu0 0.0
    %1877 = vmatpush.msra.mxu0 0.0
    %1878 = vmatpush.msra.mxu0 0.0
    %1879 = vmatpush.msra.mxu0 %v560
    %1880 = vmatmul.f32.gmra.mxu0 %v428
    %v1881 = vpop.f32.mrf.mxu0
    %v1882 = vadd.f32 %v212, %v1881
    %1883 = vdwg.mxu0
    %1884 = vmatpush.msra.mxu0 0.0
    %1885 = vmatpush.msra.mxu0 0.0
    %1886 = vmatpush.msra.mxu0 0.0
    %1887 = vmatpush.msra.mxu0 0.0
    %1888 = vmatpush.msra.mxu0 0.0
    %1889 = vmatpush.msra.mxu0 0.0
    %1890 = vmatpush.msra.mxu0 0.0
    %1891 = vmatpush.msra.mxu0 0.0
    %1892 = vmatpush.msra.mxu0 0.0
    %1893 = vmatpush.msra.mxu0 0.0
    %1894 = vmatpush.msra.mxu0 0.0
    %1895 = vmatpush.msra.mxu0 0.0
    %1896 = vmatpush.msra.mxu0 0.0
    %1897 = vmatpush.msra.mxu0 0.0
    %1898 = vmatpush.msra.mxu0 0.0
    %1899 = vmatpush.msra.mxu0 %v562
    %1900 = vmatmul.f32.gmra.mxu0 %v428
    %v1901 = vpop.f32.mrf.mxu0
    %v1902 = vadd.f32 %v213, %v1901
    %1903 = vdwg.mxu0
    %v1904 = vmax.f32 %v582, 0.0
    %v1905 = vmax.f32 %v602, 0.0
    %v1906 = vmax.f32 %v622, 0.0
    %v1907 = vmax.f32 %v642, 0.0
    %v1908 = vmax.f32 %v662, 0.0
    %v1909 = vmax.f32 %v682, 0.0
    %v1910 = vmax.f32 %v702, 0.0
    %v1911 = vmax.f32 %v722, 0.0
    %v1912 = vmax.f32 %v742, 0.0
    %v1913 = vmax.f32 %v762, 0.0
    %v1914 = vmax.f32 %v782, 0.0
    %v1915 = vmax.f32 %v802, 0.0
    %v1916 = vmax.f32 %v822, 0.0
    %v1917 = vmax.f32 %v842, 0.0
    %v1918 = vmax.f32 %v862, 0.0
    %v1919 = vmax.f32 %v882, 0.0
    %v1920 = vmax.f32 %v902, 0.0
    %v1921 = vmax.f32 %v922, 0.0
    %v1922 = vmax.f32 %v942, 0.0
    %v1923 = vmax.f32 %v962, 0.0
    %v1924 = vmax.f32 %v982, 0.0
    %v1925 = vmax.f32 %v1002, 0.0
    %v1926 = vmax.f32 %v1022, 0.0
    %v1927 = vmax.f32 %v1042, 0.0
    %v1928 = vmax.f32 %v1062, 0.0
    %v1929 = vmax.f32 %v1082, 0.0
    %v1930 = vmax.f32 %v1102, 0.0
    %v1931 = vmax.f32 %v1122, 0.0
    %v1932 = vmax.f32 %v1142, 0.0
    %v1933 = vmax.f32 %v1162, 0.0
    %v1934 = vmax.f32 %v1182, 0.0
    %v1935 = vmax.f32 %v1202, 0.0
    %v1936 = vmax.f32 %v1222, 0.0
    %v1937 = vmax.f32 %v1242, 0.0
    %v1938 = vmax.f32 %v1262, 0.0
    %v1939 = vmax.f32 %v1282, 0.0
    %v1940 = vmax.f32 %v1302, 0.0
    %v1941 = vmax.f32 %v1322, 0.0
    %v1942 = vmax.f32 %v1342, 0.0
    %v1943 = vmax.f32 %v1362, 0.0
    %v1944 = vmax.f32 %v1382, 0.0
    %v1945 = vmax.f32 %v1402, 0.0
    %v1946 = vmax.f32 %v1422, 0.0
    %v1947 = vmax.f32 %v1442, 0.0
    %v1948 = vmax.f32 %v1462, 0.0
    %v1949 = vmax.f32 %v1482, 0.0
    %v1950 = vmax.f32 %v1502, 0.0
    %v1951 = vmax.f32 %v1522, 0.0
    %v1952 = vmax.f32 %v1542, 0.0
    %v1953 = vmax.f32 %v1562, 0.0
    %v1954 = vmax.f32 %v1582, 0.0
    %v1955 = vmax.f32 %v1602, 0.0
    %v1956 = vmax.f32 %v1622, 0.0
    %v1957 = vmax.f32 %v1642, 0.0
    %v1958 = vmax.f32 %v1662, 0.0
    %v1959 = vmax.f32 %v1682, 0.0
    %v1960 = vmax.f32 %v1702, 0.0
    %v1961 = vmax.f32 %v1722, 0.0
    %v1962 = vmax.f32 %v1742, 0.0
    %v1963 = vmax.f32 %v1762, 0.0
    %v1964 = vmax.f32 %v1782, 0.0
    %v1965 = vmax.f32 %v1802, 0.0
    %v1966 = vmax.f32 %v1822, 0.0
    %v1967 = vmax.f32 %v1842, 0.0
    %v1968 = vmax.f32 %v1862, 0.0
    %v1969 = vmax.f32 %v1882, 0.0
    %v1970 = vmax.f32 %v1902, 0.0
    %v1971 = vpack.c.bf16 %v1904, %v1904
    %v1972 = vpack.c.bf16 %v1905, %v1905
    %v1973 = vpack.c.bf16 %v1906, %v1906
    %v1974 = vpack.c.bf16 %v1907, %v1907
    %v1975 = vpack.c.bf16 %v1908, %v1908
    %v1976 = vpack.c.bf16 %v1909, %v1909
    %v1977 = vpack.c.bf16 %v1910, %v1910
    %v1978 = vpack.c.bf16 %v1911, %v1911
    %v1979 = vpack.c.bf16 %v1912, %v1912
    %v1980 = vpack.c.bf16 %v1913, %v1913
    %v1981 = vpack.c.bf16 %v1914, %v1914
    %v1982 = vpack.c.bf16 %v1915, %v1915
    %v1983 = vpack.c.bf16 %v1916, %v1916
    %v1984 = vpack.c.bf16 %v1917, %v1917
    %v1985 = vpack.c.bf16 %v1918, %v1918
    %v1986 = vpack.c.bf16 %v1919, %v1919
    %v1987 = vpack.c.bf16 %v1920, %v1920
    %v1988 = vpack.c.bf16 %v1921, %v1921
    %v1989 = vpack.c.bf16 %v1922, %v1922
    %v1990 = vpack.c.bf16 %v1923, %v1923
    %v1991 = vpack.c.bf16 %v1924, %v1924
    %v1992 = vpack.c.bf16 %v1925, %v1925
    %v1993 = vpack.c.bf16 %v1926, %v1926
    %v1994 = vpack.c.bf16 %v1927, %v1927
    %v1995 = vpack.c.bf16 %v1928, %v1928
    %v1996 = vpack.c.bf16 %v1929, %v1929
    %v1997 = vpack.c.bf16 %v1930, %v1930
    %v1998 = vpack.c.bf16 %v1931, %v1931
    %v1999 = vpack.c.bf16 %v1932, %v1932
    %v2000 = vpack.c.bf16 %v1933, %v1933
    %v2001 = vpack.c.bf16 %v1934, %v1934
    %v2002 = vpack.c.bf16 %v1935, %v1935
    %v2003 = vpack.c.bf16 %v1936, %v1936
    %v2004 = vpack.c.bf16 %v1937, %v1937
    %v2005 = vpack.c.bf16 %v1938, %v1938
    %v2006 = vpack.c.bf16 %v1939, %v1939
    %v2007 = vpack.c.bf16 %v1940, %v1940
    %v2008 = vpack.c.bf16 %v1941, %v1941
    %v2009 = vpack.c.bf16 %v1942, %v1942
    %v2010 = vpack.c.bf16 %v1943, %v1943
    %v2011 = vpack.c.bf16 %v1944, %v1944
    %v2012 = vpack.c.bf16 %v1945, %v1945
    %v2013 = vpack.c.bf16 %v1946, %v1946
    %v2014 = vpack.c.bf16 %v1947, %v1947
    %v2015 = vpack.c.bf16 %v1948, %v1948
    %v2016 = vpack.c.bf16 %v1949, %v1949
    %v2017 = vpack.c.bf16 %v1950, %v1950
    %v2018 = vpack.c.bf16 %v1951, %v1951
    %v2019 = vpack.c.bf16 %v1952, %v1952
    %v2020 = vpack.c.bf16 %v1953, %v1953
    %v2021 = vpack.c.bf16 %v1954, %v1954
    %v2022 = vpack.c.bf16 %v1955, %v1955
    %v2023 = vpack.c.bf16 %v1956, %v1956
    %v2024 = vpack.c.bf16 %v1957, %v1957
    %v2025 = vpack.c.bf16 %v1958, %v1958
    %v2026 = vpack.c.bf16 %v1959, %v1959
    %v2027 = vpack.c.bf16 %v1960, %v1960
    %v2028 = vpack.c.bf16 %v1961, %v1961
    %v2029 = vpack.c.bf16 %v1962, %v1962
    %v2030 = vpack.c.bf16 %v1963, %v1963
    %v2031 = vpack.c.bf16 %v1964, %v1964
    %v2032 = vpack.c.bf16 %v1965, %v1965
    %v2033 = vpack.c.bf16 %v1966, %v1966
    %v2034 = vpack.c.bf16 %v1967, %v1967
    %v2035 = vpack.c.bf16 %v1968, %v1968
    %v2036 = vpack.c.bf16 %v1969, %v1969
    %v2037 = vpack.c.bf16 %v1970, %v1970
    %v2038 = vld [vmem:[#allocation5] sm:$0xff]
    %v2039 = vld [vmem:[#allocation5 + $0x8] sm:$0xff]
    %v2040 = vld [vmem:[#allocation5 + $0x10] sm:$0xff]
    %v2041 = vld [vmem:[#allocation5 + $0x18] sm:$0xff]
    %v2042 = vld [vmem:[#allocation5 + $0x20] sm:$0xff]
    %v2043 = vld [vmem:[#allocation5 + $0x28] sm:$0xff]
    %v2044 = vld [vmem:[#allocation5 + $0x30] sm:$0xff]
    %v2045 = vld [vmem:[#allocation5 + $0x38] sm:$0xff]
    %v2046 = vld [vmem:[#allocation5 + $0x40] sm:$0xff]
    %v2047 = vld [vmem:[#allocation5 + $0x48] sm:$0xff]
    %v2048 = vld [vmem:[#allocation5 + $0x50] sm:$0xff]
    %v2049 = vld [vmem:[#allocation5 + $0x58] sm:$0xff]
    %v2050 = vld [vmem:[#allocation5 + $0x60] sm:$0xff]
    %v2051 = vld [vmem:[#allocation5 + $0x68] sm:$0xff]
    %v2052 = vld [vmem:[#allocation5 + $0x70] sm:$0xff]
    %v2053 = vld [vmem:[#allocation5 + $0x78] sm:$0xff]
    %v2054 = vld [vmem:[#allocation5 + $0x80] sm:$0x3f]
    %v2055 = vld [vmem:[%s4] sm:$0x1]
    %v2057 = vperm.slane %v2055, 0
    %2060 = vst [vmem:[#allocation1] ss:$4 sm:$0xff] %v2038
    %s2062 = scalar_lea.vmem [#allocation1], 32
    %2063 = vst [vmem:[%s2062] ss:$4 sm:$0xff] %v2039
    %v2064 = vld.sshfl [vmem:[#allocation1] sm:$0xff pattern:$0x73625140]
    %v2065 = vld.sshfl [vmem:[#allocation1 + $0x8] sm:$0xff pattern:$0x73625140]
    %v2066 = vld.sshfl [vmem:[#allocation1 + $0x10] sm:$0xff pattern:$0x73625140]
    %v2067 = vld.sshfl [vmem:[#allocation1 + $0x18] sm:$0xff pattern:$0x73625140]
    %v2068 = vld.sshfl [vmem:[#allocation1 + $0x20] sm:$0xff pattern:$0x73625140]
    %v2069 = vld.sshfl [vmem:[#allocation1 + $0x28] sm:$0xff pattern:$0x73625140]
    %v2070 = vld.sshfl [vmem:[#allocation1 + $0x30] sm:$0xff pattern:$0x73625140]
    %v2071 = vld.sshfl [vmem:[#allocation1 + $0x38] sm:$0xff pattern:$0x73625140]
    %2073 = vst [vmem:[#allocation1] ss:$4 sm:$0xff] %v2040
    %2075 = vst [vmem:[%s2062] ss:$4 sm:$0xff] %v2041
    %v2076 = vld.sshfl [vmem:[#allocation1] sm:$0xff pattern:$0x73625140]
    %v2077 = vld.sshfl [vmem:[#allocation1 + $0x8] sm:$0xff pattern:$0x73625140]
    %v2078 = vld.sshfl [vmem:[#allocation1 + $0x10] sm:$0xff pattern:$0x73625140]
    %v2079 = vld.sshfl [vmem:[#allocation1 + $0x18] sm:$0xff pattern:$0x73625140]
    %v2080 = vld.sshfl [vmem:[#allocation1 + $0x20] sm:$0xff pattern:$0x73625140]
    %v2081 = vld.sshfl [vmem:[#allocation1 + $0x28] sm:$0xff pattern:$0x73625140]
    %v2082 = vld.sshfl [vmem:[#allocation1 + $0x30] sm:$0xff pattern:$0x73625140]
    %v2083 = vld.sshfl [vmem:[#allocation1 + $0x38] sm:$0xff pattern:$0x73625140]
    %2085 = vst [vmem:[#allocation1] ss:$4 sm:$0xff] %v2042
    %2087 = vst [vmem:[%s2062] ss:$4 sm:$0xff] %v2043
    %v2088 = vld.sshfl [vmem:[#allocation1] sm:$0xff pattern:$0x73625140]
    %v2089 = vld.sshfl [vmem:[#allocation1 + $0x8] sm:$0xff pattern:$0x73625140]
    %v2090 = vld.sshfl [vmem:[#allocation1 + $0x10] sm:$0xff pattern:$0x73625140]
    %v2091 = vld.sshfl [vmem:[#allocation1 + $0x18] sm:$0xff pattern:$0x73625140]
    %v2092 = vld.sshfl [vmem:[#allocation1 + $0x20] sm:$0xff pattern:$0x73625140]
    %v2093 = vld.sshfl [vmem:[#allocation1 + $0x28] sm:$0xff pattern:$0x73625140]
    %v2094 = vld.sshfl [vmem:[#allocation1 + $0x30] sm:$0xff pattern:$0x73625140]
    %v2095 = vld.sshfl [vmem:[#allocation1 + $0x38] sm:$0xff pattern:$0x73625140]
    %2097 = vst [vmem:[#allocation1] ss:$4 sm:$0xff] %v2044
    %2099 = vst [vmem:[%s2062] ss:$4 sm:$0xff] %v2045
    %v2100 = vld.sshfl [vmem:[#allocation1] sm:$0xff pattern:$0x73625140]
    %v2101 = vld.sshfl [vmem:[#allocation1 + $0x8] sm:$0xff pattern:$0x73625140]
    %v2102 = vld.sshfl [vmem:[#allocation1 + $0x10] sm:$0xff pattern:$0x73625140]
    %v2103 = vld.sshfl [vmem:[#allocation1 + $0x18] sm:$0xff pattern:$0x73625140]
    %v2104 = vld.sshfl [vmem:[#allocation1 + $0x20] sm:$0xff pattern:$0x73625140]
    %v2105 = vld.sshfl [vmem:[#allocation1 + $0x28] sm:$0xff pattern:$0x73625140]
    %v2106 = vld.sshfl [vmem:[#allocation1 + $0x30] sm:$0xff pattern:$0x73625140]
    %v2107 = vld.sshfl [vmem:[#allocation1 + $0x38] sm:$0xff pattern:$0x73625140]
    %2109 = vst [vmem:[#allocation1] ss:$4 sm:$0xff] %v2046
    %2111 = vst [vmem:[%s2062] ss:$4 sm:$0xff] %v2047
    %v2112 = vld.sshfl [vmem:[#allocation1] sm:$0xff pattern:$0x73625140]
    %v2113 = vld.sshfl [vmem:[#allocation1 + $0x8] sm:$0xff pattern:$0x73625140]
    %v2114 = vld.sshfl [vmem:[#allocation1 + $0x10] sm:$0xff pattern:$0x73625140]
    %v2115 = vld.sshfl [vmem:[#allocation1 + $0x18] sm:$0xff pattern:$0x73625140]
    %v2116 = vld.sshfl [vmem:[#allocation1 + $0x20] sm:$0xff pattern:$0x73625140]
    %v2117 = vld.sshfl [vmem:[#allocation1 + $0x28] sm:$0xff pattern:$0x73625140]
    %v2118 = vld.sshfl [vmem:[#allocation1 + $0x30] sm:$0xff pattern:$0x73625140]
    %v2119 = vld.sshfl [vmem:[#allocation1 + $0x38] sm:$0xff pattern:$0x73625140]
    %2121 = vst [vmem:[#allocation1] ss:$4 sm:$0xff] %v2048
    %2123 = vst [vmem:[%s2062] ss:$4 sm:$0xff] %v2049
    %v2124 = vld.sshfl [vmem:[#allocation1] sm:$0xff pattern:$0x73625140]
    %v2125 = vld.sshfl [vmem:[#allocation1 + $0x8] sm:$0xff pattern:$0x73625140]
    %v2126 = vld.sshfl [vmem:[#allocation1 + $0x10] sm:$0xff pattern:$0x73625140]
    %v2127 = vld.sshfl [vmem:[#allocation1 + $0x18] sm:$0xff pattern:$0x73625140]
    %v2128 = vld.sshfl [vmem:[#allocation1 + $0x20] sm:$0xff pattern:$0x73625140]
    %v2129 = vld.sshfl [vmem:[#allocation1 + $0x28] sm:$0xff pattern:$0x73625140]
    %v2130 = vld.sshfl [vmem:[#allocation1 + $0x30] sm:$0xff pattern:$0x73625140]
    %v2131 = vld.sshfl [vmem:[#allocation1 + $0x38] sm:$0xff pattern:$0x73625140]
    %2133 = vst [vmem:[#allocation1] ss:$4 sm:$0xff] %v2050
    %2135 = vst [vmem:[%s2062] ss:$4 sm:$0xff] %v2051
    %v2136 = vld.sshfl [vmem:[#allocation1] sm:$0xff pattern:$0x73625140]
    %v2137 = vld.sshfl [vmem:[#allocation1 + $0x8] sm:$0xff pattern:$0x73625140]
    %v2138 = vld.sshfl [vmem:[#allocation1 + $0x10] sm:$0xff pattern:$0x73625140]
    %v2139 = vld.sshfl [vmem:[#allocation1 + $0x18] sm:$0xff pattern:$0x73625140]
    %v2140 = vld.sshfl [vmem:[#allocation1 + $0x20] sm:$0xff pattern:$0x73625140]
    %v2141 = vld.sshfl [vmem:[#allocation1 + $0x28] sm:$0xff pattern:$0x73625140]
    %v2142 = vld.sshfl [vmem:[#allocation1 + $0x30] sm:$0xff pattern:$0x73625140]
    %v2143 = vld.sshfl [vmem:[#allocation1 + $0x38] sm:$0xff pattern:$0x73625140]
    %2145 = vst [vmem:[#allocation1] ss:$4 sm:$0xff] %v2052
    %2147 = vst [vmem:[%s2062] ss:$4 sm:$0xff] %v2053
    %v2148 = vld.sshfl [vmem:[#allocation1] sm:$0xff pattern:$0x73625140]
    %v2149 = vld.sshfl [vmem:[#allocation1 + $0x8] sm:$0xff pattern:$0x73625140]
    %v2150 = vld.sshfl [vmem:[#allocation1 + $0x10] sm:$0xff pattern:$0x73625140]
    %v2151 = vld.sshfl [vmem:[#allocation1 + $0x18] sm:$0xff pattern:$0x73625140]
    %v2152 = vld.sshfl [vmem:[#allocation1 + $0x20] sm:$0xff pattern:$0x73625140]
    %v2153 = vld.sshfl [vmem:[#allocation1 + $0x28] sm:$0xff pattern:$0x73625140]
    %v2154 = vld.sshfl [vmem:[#allocation1 + $0x30] sm:$0xff pattern:$0x73625140]
    %v2155 = vld.sshfl [vmem:[#allocation1 + $0x38] sm:$0xff pattern:$0x73625140]
    %2157 = vst [vmem:[#allocation1] ss:$4 sm:$0xff] %v2054
    %v2158 = vld.sshfl [vmem:[#allocation1] sm:$0xff pattern:$0x73625140]
    %v2159 = vld.sshfl [vmem:[#allocation1 + $0x8] sm:$0xff pattern:$0x73625140]
    %v2160 = vld.sshfl [vmem:[#allocation1 + $0x10] sm:$0xff pattern:$0x73625140]
    %2228 = vmatpush.bf16.xpose.msra.mxu0 0
    %2229 = vmatpush.bf16.xpose.msra.mxu0 0
    %2230 = vmatpush.bf16.xpose.msra.mxu0 0
    %2231 = vmatpush.bf16.xpose.msra.mxu0 0
    %2232 = vmatpush.bf16.xpose.msra.mxu0 0
    %2233 = vmatpush.bf16.xpose.msra.mxu0 0
    %2234 = vmatpush.bf16.xpose.msra.mxu0 0
    %2235 = vmatpush.bf16.xpose.msra.mxu0 %v2064
    %2236 = vmatmul.bf16.gmra.mxu0 %v1971
    %v2237 = vpop.f32.mrf.mxu0
    %v2238 = vadd.f32 %v2057, %v2237
    %v2239 = vpop.f32.mrf.mxu0
    %2240 = vdwg.mxu0
    %2241 = vmatpush.bf16.xpose.msra.mxu0 0
    %2242 = vmatpush.bf16.xpose.msra.mxu0 0
    %2243 = vmatpush.bf16.xpose.msra.mxu0 0
    %2244 = vmatpush.bf16.xpose.msra.mxu0 0
    %2245 = vmatpush.bf16.xpose.msra.mxu0 0
    %2246 = vmatpush.bf16.xpose.msra.mxu0 0
    %2247 = vmatpush.bf16.xpose.msra.mxu0 0
    %2248 = vmatpush.bf16.xpose.msra.mxu0 %v2065
    %2249 = vmatmul.bf16.gmra.mxu0 %v1972
    %v2250 = vpop.f32.mrf.mxu0
    %v2251 = vadd.f32 %v2238, %v2250
    %v2252 = vpop.f32.mrf.mxu0
    %2253 = vdwg.mxu0
    %2254 = vmatpush.bf16.xpose.msra.mxu0 0
    %2255 = vmatpush.bf16.xpose.msra.mxu0 0
    %2256 = vmatpush.bf16.xpose.msra.mxu0 0
    %2257 = vmatpush.bf16.xpose.msra.mxu0 0
    %2258 = vmatpush.bf16.xpose.msra.mxu0 0
    %2259 = vmatpush.bf16.xpose.msra.mxu0 0
    %2260 = vmatpush.bf16.xpose.msra.mxu0 0
    %2261 = vmatpush.bf16.xpose.msra.mxu0 %v2066
    %2262 = vmatmul.bf16.gmra.mxu0 %v1973
    %v2263 = vpop.f32.mrf.mxu0
    %v2264 = vadd.f32 %v2251, %v2263
    %v2265 = vpop.f32.mrf.mxu0
    %2266 = vdwg.mxu0
    %2267 = vmatpush.bf16.xpose.msra.mxu0 0
    %2268 = vmatpush.bf16.xpose.msra.mxu0 0
    %2269 = vmatpush.bf16.xpose.msra.mxu0 0
    %2270 = vmatpush.bf16.xpose.msra.mxu0 0
    %2271 = vmatpush.bf16.xpose.msra.mxu0 0
    %2272 = vmatpush.bf16.xpose.msra.mxu0 0
    %2273 = vmatpush.bf16.xpose.msra.mxu0 0
    %2274 = vmatpush.bf16.xpose.msra.mxu0 %v2067
    %2275 = vmatmul.bf16.gmra.mxu0 %v1974
    %v2276 = vpop.f32.mrf.mxu0
    %v2277 = vadd.f32 %v2264, %v2276
    %v2278 = vpop.f32.mrf.mxu0
    %2279 = vdwg.mxu0
    %2280 = vmatpush.bf16.xpose.msra.mxu0 0
    %2281 = vmatpush.bf16.xpose.msra.mxu0 0
    %2282 = vmatpush.bf16.xpose.msra.mxu0 0
    %2283 = vmatpush.bf16.xpose.msra.mxu0 0
    %2284 = vmatpush.bf16.xpose.msra.mxu0 0
    %2285 = vmatpush.bf16.xpose.msra.mxu0 0
    %2286 = vmatpush.bf16.xpose.msra.mxu0 0
    %2287 = vmatpush.bf16.xpose.msra.mxu0 %v2068
    %2288 = vmatmul.bf16.gmra.mxu0 %v1975
    %v2289 = vpop.f32.mrf.mxu0
    %v2290 = vadd.f32 %v2277, %v2289
    %v2291 = vpop.f32.mrf.mxu0
    %2292 = vdwg.mxu0
    %2293 = vmatpush.bf16.xpose.msra.mxu0 0
    %2294 = vmatpush.bf16.xpose.msra.mxu0 0
    %2295 = vmatpush.bf16.xpose.msra.mxu0 0
    %2296 = vmatpush.bf16.xpose.msra.mxu0 0
    %2297 = vmatpush.bf16.xpose.msra.mxu0 0
    %2298 = vmatpush.bf16.xpose.msra.mxu0 0
    %2299 = vmatpush.bf16.xpose.msra.mxu0 0
    %2300 = vmatpush.bf16.xpose.msra.mxu0 %v2069
    %2301 = vmatmul.bf16.gmra.mxu0 %v1976
    %v2302 = vpop.f32.mrf.mxu0
    %v2303 = vadd.f32 %v2290, %v2302
    %v2304 = vpop.f32.mrf.mxu0
    %2305 = vdwg.mxu0
    %2306 = vmatpush.bf16.xpose.msra.mxu0 0
    %2307 = vmatpush.bf16.xpose.msra.mxu0 0
    %2308 = vmatpush.bf16.xpose.msra.mxu0 0
    %2309 = vmatpush.bf16.xpose.msra.mxu0 0
    %2310 = vmatpush.bf16.xpose.msra.mxu0 0
    %2311 = vmatpush.bf16.xpose.msra.mxu0 0
    %2312 = vmatpush.bf16.xpose.msra.mxu0 0
    %2313 = vmatpush.bf16.xpose.msra.mxu0 %v2070
    %2314 = vmatmul.bf16.gmra.mxu0 %v1977
    %v2315 = vpop.f32.mrf.mxu0
    %v2316 = vadd.f32 %v2303, %v2315
    %v2317 = vpop.f32.mrf.mxu0
    %2318 = vdwg.mxu0
    %2319 = vmatpush.bf16.xpose.msra.mxu0 0
    %2320 = vmatpush.bf16.xpose.msra.mxu0 0
    %2321 = vmatpush.bf16.xpose.msra.mxu0 0
    %2322 = vmatpush.bf16.xpose.msra.mxu0 0
    %2323 = vmatpush.bf16.xpose.msra.mxu0 0
    %2324 = vmatpush.bf16.xpose.msra.mxu0 0
    %2325 = vmatpush.bf16.xpose.msra.mxu0 0
    %2326 = vmatpush.bf16.xpose.msra.mxu0 %v2071
    %2327 = vmatmul.bf16.gmra.mxu0 %v1978
    %v2328 = vpop.f32.mrf.mxu0
    %v2329 = vadd.f32 %v2316, %v2328
    %v2330 = vpop.f32.mrf.mxu0
    %2331 = vdwg.mxu0
    %2332 = vmatpush.bf16.xpose.msra.mxu0 0
    %2333 = vmatpush.bf16.xpose.msra.mxu0 0
    %2334 = vmatpush.bf16.xpose.msra.mxu0 0
    %2335 = vmatpush.bf16.xpose.msra.mxu0 0
    %2336 = vmatpush.bf16.xpose.msra.mxu0 0
    %2337 = vmatpush.bf16.xpose.msra.mxu0 0
    %2338 = vmatpush.bf16.xpose.msra.mxu0 0
    %2339 = vmatpush.bf16.xpose.msra.mxu0 %v2076
    %2340 = vmatmul.bf16.gmra.mxu0 %v1979
    %v2341 = vpop.f32.mrf.mxu0
    %v2342 = vadd.f32 %v2329, %v2341
    %v2343 = vpop.f32.mrf.mxu0
    %2344 = vdwg.mxu0
    %2345 = vmatpush.bf16.xpose.msra.mxu0 0
    %2346 = vmatpush.bf16.xpose.msra.mxu0 0
    %2347 = vmatpush.bf16.xpose.msra.mxu0 0
    %2348 = vmatpush.bf16.xpose.msra.mxu0 0
    %2349 = vmatpush.bf16.xpose.msra.mxu0 0
    %2350 = vmatpush.bf16.xpose.msra.mxu0 0
    %2351 = vmatpush.bf16.xpose.msra.mxu0 0
    %2352 = vmatpush.bf16.xpose.msra.mxu0 %v2077
    %2353 = vmatmul.bf16.gmra.mxu0 %v1980
    %v2354 = vpop.f32.mrf.mxu0
    %v2355 = vadd.f32 %v2342, %v2354
    %v2356 = vpop.f32.mrf.mxu0
    %2357 = vdwg.mxu0
    %2358 = vmatpush.bf16.xpose.msra.mxu0 0
    %2359 = vmatpush.bf16.xpose.msra.mxu0 0
    %2360 = vmatpush.bf16.xpose.msra.mxu0 0
    %2361 = vmatpush.bf16.xpose.msra.mxu0 0
    %2362 = vmatpush.bf16.xpose.msra.mxu0 0
    %2363 = vmatpush.bf16.xpose.msra.mxu0 0
    %2364 = vmatpush.bf16.xpose.msra.mxu0 0
    %2365 = vmatpush.bf16.xpose.msra.mxu0 %v2078
    %2366 = vmatmul.bf16.gmra.mxu0 %v1981
    %v2367 = vpop.f32.mrf.mxu0
    %v2368 = vadd.f32 %v2355, %v2367
    %v2369 = vpop.f32.mrf.mxu0
    %2370 = vdwg.mxu0
    %2371 = vmatpush.bf16.xpose.msra.mxu0 0
    %2372 = vmatpush.bf16.xpose.msra.mxu0 0
    %2373 = vmatpush.bf16.xpose.msra.mxu0 0
    %2374 = vmatpush.bf16.xpose.msra.mxu0 0
    %2375 = vmatpush.bf16.xpose.msra.mxu0 0
    %2376 = vmatpush.bf16.xpose.msra.mxu0 0
    %2377 = vmatpush.bf16.xpose.msra.mxu0 0
    %2378 = vmatpush.bf16.xpose.msra.mxu0 %v2079
    %2379 = vmatmul.bf16.gmra.mxu0 %v1982
    %v2380 = vpop.f32.mrf.mxu0
    %v2381 = vadd.f32 %v2368, %v2380
    %v2382 = vpop.f32.mrf.mxu0
    %2383 = vdwg.mxu0
    %2384 = vmatpush.bf16.xpose.msra.mxu0 0
    %2385 = vmatpush.bf16.xpose.msra.mxu0 0
    %2386 = vmatpush.bf16.xpose.msra.mxu0 0
    %2387 = vmatpush.bf16.xpose.msra.mxu0 0
    %2388 = vmatpush.bf16.xpose.msra.mxu0 0
    %2389 = vmatpush.bf16.xpose.msra.mxu0 0
    %2390 = vmatpush.bf16.xpose.msra.mxu0 0
    %2391 = vmatpush.bf16.xpose.msra.mxu0 %v2080
    %2392 = vmatmul.bf16.gmra.mxu0 %v1983
    %v2393 = vpop.f32.mrf.mxu0
    %v2394 = vadd.f32 %v2381, %v2393
    %v2395 = vpop.f32.mrf.mxu0
    %2396 = vdwg.mxu0
    %2397 = vmatpush.bf16.xpose.msra.mxu0 0
    %2398 = vmatpush.bf16.xpose.msra.mxu0 0
    %2399 = vmatpush.bf16.xpose.msra.mxu0 0
    %2400 = vmatpush.bf16.xpose.msra.mxu0 0
    %2401 = vmatpush.bf16.xpose.msra.mxu0 0
    %2402 = vmatpush.bf16.xpose.msra.mxu0 0
    %2403 = vmatpush.bf16.xpose.msra.mxu0 0
    %2404 = vmatpush.bf16.xpose.msra.mxu0 %v2081
    %2405 = vmatmul.bf16.gmra.mxu0 %v1984
    %v2406 = vpop.f32.mrf.mxu0
    %v2407 = vadd.f32 %v2394, %v2406
    %v2408 = vpop.f32.mrf.mxu0
    %2409 = vdwg.mxu0
    %2410 = vmatpush.bf16.xpose.msra.mxu0 0
    %2411 = vmatpush.bf16.xpose.msra.mxu0 0
    %2412 = vmatpush.bf16.xpose.msra.mxu0 0
    %2413 = vmatpush.bf16.xpose.msra.mxu0 0
    %2414 = vmatpush.bf16.xpose.msra.mxu0 0
    %2415 = vmatpush.bf16.xpose.msra.mxu0 0
    %2416 = vmatpush.bf16.xpose.msra.mxu0 0
    %2417 = vmatpush.bf16.xpose.msra.mxu0 %v2082
    %2418 = vmatmul.bf16.gmra.mxu0 %v1985
    %v2419 = vpop.f32.mrf.mxu0
    %v2420 = vadd.f32 %v2407, %v2419
    %v2421 = vpop.f32.mrf.mxu0
    %2422 = vdwg.mxu0
    %2423 = vmatpush.bf16.xpose.msra.mxu0 0
    %2424 = vmatpush.bf16.xpose.msra.mxu0 0
    %2425 = vmatpush.bf16.xpose.msra.mxu0 0
    %2426 = vmatpush.bf16.xpose.msra.mxu0 0
    %2427 = vmatpush.bf16.xpose.msra.mxu0 0
    %2428 = vmatpush.bf16.xpose.msra.mxu0 0
    %2429 = vmatpush.bf16.xpose.msra.mxu0 0
    %2430 = vmatpush.bf16.xpose.msra.mxu0 %v2083
    %2431 = vmatmul.bf16.gmra.mxu0 %v1986
    %v2432 = vpop.f32.mrf.mxu0
    %v2433 = vadd.f32 %v2420, %v2432
    %v2434 = vpop.f32.mrf.mxu0
    %2435 = vdwg.mxu0
    %2436 = vmatpush.bf16.xpose.msra.mxu0 0
    %2437 = vmatpush.bf16.xpose.msra.mxu0 0
    %2438 = vmatpush.bf16.xpose.msra.mxu0 0
    %2439 = vmatpush.bf16.xpose.msra.mxu0 0
    %2440 = vmatpush.bf16.xpose.msra.mxu0 0
    %2441 = vmatpush.bf16.xpose.msra.mxu0 0
    %2442 = vmatpush.bf16.xpose.msra.mxu0 0
    %2443 = vmatpush.bf16.xpose.msra.mxu0 %v2088
    %2444 = vmatmul.bf16.gmra.mxu0 %v1987
    %v2445 = vpop.f32.mrf.mxu0
    %v2446 = vadd.f32 %v2433, %v2445
    %v2447 = vpop.f32.mrf.mxu0
    %2448 = vdwg.mxu0
    %2449 = vmatpush.bf16.xpose.msra.mxu0 0
    %2450 = vmatpush.bf16.xpose.msra.mxu0 0
    %2451 = vmatpush.bf16.xpose.msra.mxu0 0
    %2452 = vmatpush.bf16.xpose.msra.mxu0 0
    %2453 = vmatpush.bf16.xpose.msra.mxu0 0
    %2454 = vmatpush.bf16.xpose.msra.mxu0 0
    %2455 = vmatpush.bf16.xpose.msra.mxu0 0
    %2456 = vmatpush.bf16.xpose.msra.mxu0 %v2089
    %2457 = vmatmul.bf16.gmra.mxu0 %v1988
    %v2458 = vpop.f32.mrf.mxu0
    %v2459 = vadd.f32 %v2446, %v2458
    %v2460 = vpop.f32.mrf.mxu0
    %2461 = vdwg.mxu0
    %2462 = vmatpush.bf16.xpose.msra.mxu0 0
    %2463 = vmatpush.bf16.xpose.msra.mxu0 0
    %2464 = vmatpush.bf16.xpose.msra.mxu0 0
    %2465 = vmatpush.bf16.xpose.msra.mxu0 0
    %2466 = vmatpush.bf16.xpose.msra.mxu0 0
    %2467 = vmatpush.bf16.xpose.msra.mxu0 0
    %2468 = vmatpush.bf16.xpose.msra.mxu0 0
    %2469 = vmatpush.bf16.xpose.msra.mxu0 %v2090
    %2470 = vmatmul.bf16.gmra.mxu0 %v1989
    %v2471 = vpop.f32.mrf.mxu0
    %v2472 = vadd.f32 %v2459, %v2471
    %v2473 = vpop.f32.mrf.mxu0
    %2474 = vdwg.mxu0
    %2475 = vmatpush.bf16.xpose.msra.mxu0 0
    %2476 = vmatpush.bf16.xpose.msra.mxu0 0
    %2477 = vmatpush.bf16.xpose.msra.mxu0 0
    %2478 = vmatpush.bf16.xpose.msra.mxu0 0
    %2479 = vmatpush.bf16.xpose.msra.mxu0 0
    %2480 = vmatpush.bf16.xpose.msra.mxu0 0
    %2481 = vmatpush.bf16.xpose.msra.mxu0 0
    %2482 = vmatpush.bf16.xpose.msra.mxu0 %v2091
    %2483 = vmatmul.bf16.gmra.mxu0 %v1990
    %v2484 = vpop.f32.mrf.mxu0
    %v2485 = vadd.f32 %v2472, %v2484
    %v2486 = vpop.f32.mrf.mxu0
    %2487 = vdwg.mxu0
    %2488 = vmatpush.bf16.xpose.msra.mxu0 0
    %2489 = vmatpush.bf16.xpose.msra.mxu0 0
    %2490 = vmatpush.bf16.xpose.msra.mxu0 0
    %2491 = vmatpush.bf16.xpose.msra.mxu0 0
    %2492 = vmatpush.bf16.xpose.msra.mxu0 0
    %2493 = vmatpush.bf16.xpose.msra.mxu0 0
    %2494 = vmatpush.bf16.xpose.msra.mxu0 0
    %2495 = vmatpush.bf16.xpose.msra.mxu0 %v2092
    %2496 = vmatmul.bf16.gmra.mxu0 %v1991
    %v2497 = vpop.f32.mrf.mxu0
    %v2498 = vadd.f32 %v2485, %v2497
    %v2499 = vpop.f32.mrf.mxu0
    %2500 = vdwg.mxu0
    %2501 = vmatpush.bf16.xpose.msra.mxu0 0
    %2502 = vmatpush.bf16.xpose.msra.mxu0 0
    %2503 = vmatpush.bf16.xpose.msra.mxu0 0
    %2504 = vmatpush.bf16.xpose.msra.mxu0 0
    %2505 = vmatpush.bf16.xpose.msra.mxu0 0
    %2506 = vmatpush.bf16.xpose.msra.mxu0 0
    %2507 = vmatpush.bf16.xpose.msra.mxu0 0
    %2508 = vmatpush.bf16.xpose.msra.mxu0 %v2093
    %2509 = vmatmul.bf16.gmra.mxu0 %v1992
    %v2510 = vpop.f32.mrf.mxu0
    %v2511 = vadd.f32 %v2498, %v2510
    %v2512 = vpop.f32.mrf.mxu0
    %2513 = vdwg.mxu0
    %2514 = vmatpush.bf16.xpose.msra.mxu0 0
    %2515 = vmatpush.bf16.xpose.msra.mxu0 0
    %2516 = vmatpush.bf16.xpose.msra.mxu0 0
    %2517 = vmatpush.bf16.xpose.msra.mxu0 0
    %2518 = vmatpush.bf16.xpose.msra.mxu0 0
    %2519 = vmatpush.bf16.xpose.msra.mxu0 0
    %2520 = vmatpush.bf16.xpose.msra.mxu0 0
    %2521 = vmatpush.bf16.xpose.msra.mxu0 %v2094
    %2522 = vmatmul.bf16.gmra.mxu0 %v1993
    %v2523 = vpop.f32.mrf.mxu0
    %v2524 = vadd.f32 %v2511, %v2523
    %v2525 = vpop.f32.mrf.mxu0
    %2526 = vdwg.mxu0
    %2527 = vmatpush.bf16.xpose.msra.mxu0 0
    %2528 = vmatpush.bf16.xpose.msra.mxu0 0
    %2529 = vmatpush.bf16.xpose.msra.mxu0 0
    %2530 = vmatpush.bf16.xpose.msra.mxu0 0
    %2531 = vmatpush.bf16.xpose.msra.mxu0 0
    %2532 = vmatpush.bf16.xpose.msra.mxu0 0
    %2533 = vmatpush.bf16.xpose.msra.mxu0 0
    %2534 = vmatpush.bf16.xpose.msra.mxu0 %v2095
    %2535 = vmatmul.bf16.gmra.mxu0 %v1994
    %v2536 = vpop.f32.mrf.mxu0
    %v2537 = vadd.f32 %v2524, %v2536
    %v2538 = vpop.f32.mrf.mxu0
    %2539 = vdwg.mxu0
    %2540 = vmatpush.bf16.xpose.msra.mxu0 0
    %2541 = vmatpush.bf16.xpose.msra.mxu0 0
    %2542 = vmatpush.bf16.xpose.msra.mxu0 0
    %2543 = vmatpush.bf16.xpose.msra.mxu0 0
    %2544 = vmatpush.bf16.xpose.msra.mxu0 0
    %2545 = vmatpush.bf16.xpose.msra.mxu0 0
    %2546 = vmatpush.bf16.xpose.msra.mxu0 0
    %2547 = vmatpush.bf16.xpose.msra.mxu0 %v2100
    %2548 = vmatmul.bf16.gmra.mxu0 %v1995
    %v2549 = vpop.f32.mrf.mxu0
    %v2550 = vadd.f32 %v2537, %v2549
    %v2551 = vpop.f32.mrf.mxu0
    %2552 = vdwg.mxu0
    %2553 = vmatpush.bf16.xpose.msra.mxu0 0
    %2554 = vmatpush.bf16.xpose.msra.mxu0 0
    %2555 = vmatpush.bf16.xpose.msra.mxu0 0
    %2556 = vmatpush.bf16.xpose.msra.mxu0 0
    %2557 = vmatpush.bf16.xpose.msra.mxu0 0
    %2558 = vmatpush.bf16.xpose.msra.mxu0 0
    %2559 = vmatpush.bf16.xpose.msra.mxu0 0
    %2560 = vmatpush.bf16.xpose.msra.mxu0 %v2101
    %2561 = vmatmul.bf16.gmra.mxu0 %v1996
    %v2562 = vpop.f32.mrf.mxu0
    %v2563 = vadd.f32 %v2550, %v2562
    %v2564 = vpop.f32.mrf.mxu0
    %2565 = vdwg.mxu0
    %2566 = vmatpush.bf16.xpose.msra.mxu0 0
    %2567 = vmatpush.bf16.xpose.msra.mxu0 0
    %2568 = vmatpush.bf16.xpose.msra.mxu0 0
    %2569 = vmatpush.bf16.xpose.msra.mxu0 0
    %2570 = vmatpush.bf16.xpose.msra.mxu0 0
    %2571 = vmatpush.bf16.xpose.msra.mxu0 0
    %2572 = vmatpush.bf16.xpose.msra.mxu0 0
    %2573 = vmatpush.bf16.xpose.msra.mxu0 %v2102
    %2574 = vmatmul.bf16.gmra.mxu0 %v1997
    %v2575 = vpop.f32.mrf.mxu0
    %v2576 = vadd.f32 %v2563, %v2575
    %v2577 = vpop.f32.mrf.mxu0
    %2578 = vdwg.mxu0
    %2579 = vmatpush.bf16.xpose.msra.mxu0 0
    %2580 = vmatpush.bf16.xpose.msra.mxu0 0
    %2581 = vmatpush.bf16.xpose.msra.mxu0 0
    %2582 = vmatpush.bf16.xpose.msra.mxu0 0
    %2583 = vmatpush.bf16.xpose.msra.mxu0 0
    %2584 = vmatpush.bf16.xpose.msra.mxu0 0
    %2585 = vmatpush.bf16.xpose.msra.mxu0 0
    %2586 = vmatpush.bf16.xpose.msra.mxu0 %v2103
    %2587 = vmatmul.bf16.gmra.mxu0 %v1998
    %v2588 = vpop.f32.mrf.mxu0
    %v2589 = vadd.f32 %v2576, %v2588
    %v2590 = vpop.f32.mrf.mxu0
    %2591 = vdwg.mxu0
    %2592 = vmatpush.bf16.xpose.msra.mxu0 0
    %2593 = vmatpush.bf16.xpose.msra.mxu0 0
    %2594 = vmatpush.bf16.xpose.msra.mxu0 0
    %2595 = vmatpush.bf16.xpose.msra.mxu0 0
    %2596 = vmatpush.bf16.xpose.msra.mxu0 0
    %2597 = vmatpush.bf16.xpose.msra.mxu0 0
    %2598 = vmatpush.bf16.xpose.msra.mxu0 0
    %2599 = vmatpush.bf16.xpose.msra.mxu0 %v2104
    %2600 = vmatmul.bf16.gmra.mxu0 %v1999
    %v2601 = vpop.f32.mrf.mxu0
    %v2602 = vadd.f32 %v2589, %v2601
    %v2603 = vpop.f32.mrf.mxu0
    %2604 = vdwg.mxu0
    %2605 = vmatpush.bf16.xpose.msra.mxu0 0
    %2606 = vmatpush.bf16.xpose.msra.mxu0 0
    %2607 = vmatpush.bf16.xpose.msra.mxu0 0
    %2608 = vmatpush.bf16.xpose.msra.mxu0 0
    %2609 = vmatpush.bf16.xpose.msra.mxu0 0
    %2610 = vmatpush.bf16.xpose.msra.mxu0 0
    %2611 = vmatpush.bf16.xpose.msra.mxu0 0
    %2612 = vmatpush.bf16.xpose.msra.mxu0 %v2105
    %2613 = vmatmul.bf16.gmra.mxu0 %v2000
    %v2614 = vpop.f32.mrf.mxu0
    %v2615 = vadd.f32 %v2602, %v2614
    %v2616 = vpop.f32.mrf.mxu0
    %2617 = vdwg.mxu0
    %2618 = vmatpush.bf16.xpose.msra.mxu0 0
    %2619 = vmatpush.bf16.xpose.msra.mxu0 0
    %2620 = vmatpush.bf16.xpose.msra.mxu0 0
    %2621 = vmatpush.bf16.xpose.msra.mxu0 0
    %2622 = vmatpush.bf16.xpose.msra.mxu0 0
    %2623 = vmatpush.bf16.xpose.msra.mxu0 0
    %2624 = vmatpush.bf16.xpose.msra.mxu0 0
    %2625 = vmatpush.bf16.xpose.msra.mxu0 %v2106
    %2626 = vmatmul.bf16.gmra.mxu0 %v2001
    %v2627 = vpop.f32.mrf.mxu0
    %v2628 = vadd.f32 %v2615, %v2627
    %v2629 = vpop.f32.mrf.mxu0
    %2630 = vdwg.mxu0
    %2631 = vmatpush.bf16.xpose.msra.mxu0 0
    %2632 = vmatpush.bf16.xpose.msra.mxu0 0
    %2633 = vmatpush.bf16.xpose.msra.mxu0 0
    %2634 = vmatpush.bf16.xpose.msra.mxu0 0
    %2635 = vmatpush.bf16.xpose.msra.mxu0 0
    %2636 = vmatpush.bf16.xpose.msra.mxu0 0
    %2637 = vmatpush.bf16.xpose.msra.mxu0 0
    %2638 = vmatpush.bf16.xpose.msra.mxu0 %v2107
    %2639 = vmatmul.bf16.gmra.mxu0 %v2002
    %v2640 = vpop.f32.mrf.mxu0
    %v2641 = vadd.f32 %v2628, %v2640
    %v2642 = vpop.f32.mrf.mxu0
    %2643 = vdwg.mxu0
    %2644 = vmatpush.bf16.xpose.msra.mxu0 0
    %2645 = vmatpush.bf16.xpose.msra.mxu0 0
    %2646 = vmatpush.bf16.xpose.msra.mxu0 0
    %2647 = vmatpush.bf16.xpose.msra.mxu0 0
    %2648 = vmatpush.bf16.xpose.msra.mxu0 0
    %2649 = vmatpush.bf16.xpose.msra.mxu0 0
    %2650 = vmatpush.bf16.xpose.msra.mxu0 0
    %2651 = vmatpush.bf16.xpose.msra.mxu0 %v2112
    %2652 = vmatmul.bf16.gmra.mxu0 %v2003
    %v2653 = vpop.f32.mrf.mxu0
    %v2654 = vadd.f32 %v2641, %v2653
    %v2655 = vpop.f32.mrf.mxu0
    %2656 = vdwg.mxu0
    %2657 = vmatpush.bf16.xpose.msra.mxu0 0
    %2658 = vmatpush.bf16.xpose.msra.mxu0 0
    %2659 = vmatpush.bf16.xpose.msra.mxu0 0
    %2660 = vmatpush.bf16.xpose.msra.mxu0 0
    %2661 = vmatpush.bf16.xpose.msra.mxu0 0
    %2662 = vmatpush.bf16.xpose.msra.mxu0 0
    %2663 = vmatpush.bf16.xpose.msra.mxu0 0
    %2664 = vmatpush.bf16.xpose.msra.mxu0 %v2113
    %2665 = vmatmul.bf16.gmra.mxu0 %v2004
    %v2666 = vpop.f32.mrf.mxu0
    %v2667 = vadd.f32 %v2654, %v2666
    %v2668 = vpop.f32.mrf.mxu0
    %2669 = vdwg.mxu0
    %2670 = vmatpush.bf16.xpose.msra.mxu0 0
    %2671 = vmatpush.bf16.xpose.msra.mxu0 0
    %2672 = vmatpush.bf16.xpose.msra.mxu0 0
    %2673 = vmatpush.bf16.xpose.msra.mxu0 0
    %2674 = vmatpush.bf16.xpose.msra.mxu0 0
    %2675 = vmatpush.bf16.xpose.msra.mxu0 0
    %2676 = vmatpush.bf16.xpose.msra.mxu0 0
    %2677 = vmatpush.bf16.xpose.msra.mxu0 %v2114
    %2678 = vmatmul.bf16.gmra.mxu0 %v2005
    %v2679 = vpop.f32.mrf.mxu0
    %v2680 = vadd.f32 %v2667, %v2679
    %v2681 = vpop.f32.mrf.mxu0
    %2682 = vdwg.mxu0
    %2683 = vmatpush.bf16.xpose.msra.mxu0 0
    %2684 = vmatpush.bf16.xpose.msra.mxu0 0
    %2685 = vmatpush.bf16.xpose.msra.mxu0 0
    %2686 = vmatpush.bf16.xpose.msra.mxu0 0
    %2687 = vmatpush.bf16.xpose.msra.mxu0 0
    %2688 = vmatpush.bf16.xpose.msra.mxu0 0
    %2689 = vmatpush.bf16.xpose.msra.mxu0 0
    %2690 = vmatpush.bf16.xpose.msra.mxu0 %v2115
    %2691 = vmatmul.bf16.gmra.mxu0 %v2006
    %v2692 = vpop.f32.mrf.mxu0
    %v2693 = vadd.f32 %v2680, %v2692
    %v2694 = vpop.f32.mrf.mxu0
    %2695 = vdwg.mxu0
    %2696 = vmatpush.bf16.xpose.msra.mxu0 0
    %2697 = vmatpush.bf16.xpose.msra.mxu0 0
    %2698 = vmatpush.bf16.xpose.msra.mxu0 0
    %2699 = vmatpush.bf16.xpose.msra.mxu0 0
    %2700 = vmatpush.bf16.xpose.msra.mxu0 0
    %2701 = vmatpush.bf16.xpose.msra.mxu0 0
    %2702 = vmatpush.bf16.xpose.msra.mxu0 0
    %2703 = vmatpush.bf16.xpose.msra.mxu0 %v2116
    %2704 = vmatmul.bf16.gmra.mxu0 %v2007
    %v2705 = vpop.f32.mrf.mxu0
    %v2706 = vadd.f32 %v2693, %v2705
    %v2707 = vpop.f32.mrf.mxu0
    %2708 = vdwg.mxu0
    %2709 = vmatpush.bf16.xpose.msra.mxu0 0
    %2710 = vmatpush.bf16.xpose.msra.mxu0 0
    %2711 = vmatpush.bf16.xpose.msra.mxu0 0
    %2712 = vmatpush.bf16.xpose.msra.mxu0 0
    %2713 = vmatpush.bf16.xpose.msra.mxu0 0
    %2714 = vmatpush.bf16.xpose.msra.mxu0 0
    %2715 = vmatpush.bf16.xpose.msra.mxu0 0
    %2716 = vmatpush.bf16.xpose.msra.mxu0 %v2117
    %2717 = vmatmul.bf16.gmra.mxu0 %v2008
    %v2718 = vpop.f32.mrf.mxu0
    %v2719 = vadd.f32 %v2706, %v2718
    %v2720 = vpop.f32.mrf.mxu0
    %2721 = vdwg.mxu0
    %2722 = vmatpush.bf16.xpose.msra.mxu0 0
    %2723 = vmatpush.bf16.xpose.msra.mxu0 0
    %2724 = vmatpush.bf16.xpose.msra.mxu0 0
    %2725 = vmatpush.bf16.xpose.msra.mxu0 0
    %2726 = vmatpush.bf16.xpose.msra.mxu0 0
    %2727 = vmatpush.bf16.xpose.msra.mxu0 0
    %2728 = vmatpush.bf16.xpose.msra.mxu0 0
    %2729 = vmatpush.bf16.xpose.msra.mxu0 %v2118
    %2730 = vmatmul.bf16.gmra.mxu0 %v2009
    %v2731 = vpop.f32.mrf.mxu0
    %v2732 = vadd.f32 %v2719, %v2731
    %v2733 = vpop.f32.mrf.mxu0
    %2734 = vdwg.mxu0
    %2735 = vmatpush.bf16.xpose.msra.mxu0 0
    %2736 = vmatpush.bf16.xpose.msra.mxu0 0
    %2737 = vmatpush.bf16.xpose.msra.mxu0 0
    %2738 = vmatpush.bf16.xpose.msra.mxu0 0
    %2739 = vmatpush.bf16.xpose.msra.mxu0 0
    %2740 = vmatpush.bf16.xpose.msra.mxu0 0
    %2741 = vmatpush.bf16.xpose.msra.mxu0 0
    %2742 = vmatpush.bf16.xpose.msra.mxu0 %v2119
    %2743 = vmatmul.bf16.gmra.mxu0 %v2010
    %v2744 = vpop.f32.mrf.mxu0
    %v2745 = vadd.f32 %v2732, %v2744
    %v2746 = vpop.f32.mrf.mxu0
    %2747 = vdwg.mxu0
    %2748 = vmatpush.bf16.xpose.msra.mxu0 0
    %2749 = vmatpush.bf16.xpose.msra.mxu0 0
    %2750 = vmatpush.bf16.xpose.msra.mxu0 0
    %2751 = vmatpush.bf16.xpose.msra.mxu0 0
    %2752 = vmatpush.bf16.xpose.msra.mxu0 0
    %2753 = vmatpush.bf16.xpose.msra.mxu0 0
    %2754 = vmatpush.bf16.xpose.msra.mxu0 0
    %2755 = vmatpush.bf16.xpose.msra.mxu0 %v2124
    %2756 = vmatmul.bf16.gmra.mxu0 %v2011
    %v2757 = vpop.f32.mrf.mxu0
    %v2758 = vadd.f32 %v2745, %v2757
    %v2759 = vpop.f32.mrf.mxu0
    %2760 = vdwg.mxu0
    %2761 = vmatpush.bf16.xpose.msra.mxu0 0
    %2762 = vmatpush.bf16.xpose.msra.mxu0 0
    %2763 = vmatpush.bf16.xpose.msra.mxu0 0
    %2764 = vmatpush.bf16.xpose.msra.mxu0 0
    %2765 = vmatpush.bf16.xpose.msra.mxu0 0
    %2766 = vmatpush.bf16.xpose.msra.mxu0 0
    %2767 = vmatpush.bf16.xpose.msra.mxu0 0
    %2768 = vmatpush.bf16.xpose.msra.mxu0 %v2125
    %2769 = vmatmul.bf16.gmra.mxu0 %v2012
    %v2770 = vpop.f32.mrf.mxu0
    %v2771 = vadd.f32 %v2758, %v2770
    %v2772 = vpop.f32.mrf.mxu0
    %2773 = vdwg.mxu0
    %2774 = vmatpush.bf16.xpose.msra.mxu0 0
    %2775 = vmatpush.bf16.xpose.msra.mxu0 0
    %2776 = vmatpush.bf16.xpose.msra.mxu0 0
    %2777 = vmatpush.bf16.xpose.msra.mxu0 0
    %2778 = vmatpush.bf16.xpose.msra.mxu0 0
    %2779 = vmatpush.bf16.xpose.msra.mxu0 0
    %2780 = vmatpush.bf16.xpose.msra.mxu0 0
    %2781 = vmatpush.bf16.xpose.msra.mxu0 %v2126
    %2782 = vmatmul.bf16.gmra.mxu0 %v2013
    %v2783 = vpop.f32.mrf.mxu0
    %v2784 = vadd.f32 %v2771, %v2783
    %v2785 = vpop.f32.mrf.mxu0
    %2786 = vdwg.mxu0
    %2787 = vmatpush.bf16.xpose.msra.mxu0 0
    %2788 = vmatpush.bf16.xpose.msra.mxu0 0
    %2789 = vmatpush.bf16.xpose.msra.mxu0 0
    %2790 = vmatpush.bf16.xpose.msra.mxu0 0
    %2791 = vmatpush.bf16.xpose.msra.mxu0 0
    %2792 = vmatpush.bf16.xpose.msra.mxu0 0
    %2793 = vmatpush.bf16.xpose.msra.mxu0 0
    %2794 = vmatpush.bf16.xpose.msra.mxu0 %v2127
    %2795 = vmatmul.bf16.gmra.mxu0 %v2014
    %v2796 = vpop.f32.mrf.mxu0
    %v2797 = vadd.f32 %v2784, %v2796
    %v2798 = vpop.f32.mrf.mxu0
    %2799 = vdwg.mxu0
    %2800 = vmatpush.bf16.xpose.msra.mxu0 0
    %2801 = vmatpush.bf16.xpose.msra.mxu0 0
    %2802 = vmatpush.bf16.xpose.msra.mxu0 0
    %2803 = vmatpush.bf16.xpose.msra.mxu0 0
    %2804 = vmatpush.bf16.xpose.msra.mxu0 0
    %2805 = vmatpush.bf16.xpose.msra.mxu0 0
    %2806 = vmatpush.bf16.xpose.msra.mxu0 0
    %2807 = vmatpush.bf16.xpose.msra.mxu0 %v2128
    %2808 = vmatmul.bf16.gmra.mxu0 %v2015
    %v2809 = vpop.f32.mrf.mxu0
    %v2810 = vadd.f32 %v2797, %v2809
    %v2811 = vpop.f32.mrf.mxu0
    %2812 = vdwg.mxu0
    %2813 = vmatpush.bf16.xpose.msra.mxu0 0
    %2814 = vmatpush.bf16.xpose.msra.mxu0 0
    %2815 = vmatpush.bf16.xpose.msra.mxu0 0
    %2816 = vmatpush.bf16.xpose.msra.mxu0 0
    %2817 = vmatpush.bf16.xpose.msra.mxu0 0
    %2818 = vmatpush.bf16.xpose.msra.mxu0 0
    %2819 = vmatpush.bf16.xpose.msra.mxu0 0
    %2820 = vmatpush.bf16.xpose.msra.mxu0 %v2129
    %2821 = vmatmul.bf16.gmra.mxu0 %v2016
    %v2822 = vpop.f32.mrf.mxu0
    %v2823 = vadd.f32 %v2810, %v2822
    %v2824 = vpop.f32.mrf.mxu0
    %2825 = vdwg.mxu0
    %2826 = vmatpush.bf16.xpose.msra.mxu0 0
    %2827 = vmatpush.bf16.xpose.msra.mxu0 0
    %2828 = vmatpush.bf16.xpose.msra.mxu0 0
    %2829 = vmatpush.bf16.xpose.msra.mxu0 0
    %2830 = vmatpush.bf16.xpose.msra.mxu0 0
    %2831 = vmatpush.bf16.xpose.msra.mxu0 0
    %2832 = vmatpush.bf16.xpose.msra.mxu0 0
    %2833 = vmatpush.bf16.xpose.msra.mxu0 %v2130
    %2834 = vmatmul.bf16.gmra.mxu0 %v2017
    %v2835 = vpop.f32.mrf.mxu0
    %v2836 = vadd.f32 %v2823, %v2835
    %v2837 = vpop.f32.mrf.mxu0
    %2838 = vdwg.mxu0
    %2839 = vmatpush.bf16.xpose.msra.mxu0 0
    %2840 = vmatpush.bf16.xpose.msra.mxu0 0
    %2841 = vmatpush.bf16.xpose.msra.mxu0 0
    %2842 = vmatpush.bf16.xpose.msra.mxu0 0
    %2843 = vmatpush.bf16.xpose.msra.mxu0 0
    %2844 = vmatpush.bf16.xpose.msra.mxu0 0
    %2845 = vmatpush.bf16.xpose.msra.mxu0 0
    %2846 = vmatpush.bf16.xpose.msra.mxu0 %v2131
    %2847 = vmatmul.bf16.gmra.mxu0 %v2018
    %v2848 = vpop.f32.mrf.mxu0
    %v2849 = vadd.f32 %v2836, %v2848
    %v2850 = vpop.f32.mrf.mxu0
    %2851 = vdwg.mxu0
    %2852 = vmatpush.bf16.xpose.msra.mxu0 0
    %2853 = vmatpush.bf16.xpose.msra.mxu0 0
    %2854 = vmatpush.bf16.xpose.msra.mxu0 0
    %2855 = vmatpush.bf16.xpose.msra.mxu0 0
    %2856 = vmatpush.bf16.xpose.msra.mxu0 0
    %2857 = vmatpush.bf16.xpose.msra.mxu0 0
    %2858 = vmatpush.bf16.xpose.msra.mxu0 0
    %2859 = vmatpush.bf16.xpose.msra.mxu0 %v2136
    %2860 = vmatmul.bf16.gmra.mxu0 %v2019
    %v2861 = vpop.f32.mrf.mxu0
    %v2862 = vadd.f32 %v2849, %v2861
    %v2863 = vpop.f32.mrf.mxu0
    %2864 = vdwg.mxu0
    %2865 = vmatpush.bf16.xpose.msra.mxu0 0
    %2866 = vmatpush.bf16.xpose.msra.mxu0 0
    %2867 = vmatpush.bf16.xpose.msra.mxu0 0
    %2868 = vmatpush.bf16.xpose.msra.mxu0 0
    %2869 = vmatpush.bf16.xpose.msra.mxu0 0
    %2870 = vmatpush.bf16.xpose.msra.mxu0 0
    %2871 = vmatpush.bf16.xpose.msra.mxu0 0
    %2872 = vmatpush.bf16.xpose.msra.mxu0 %v2137
    %2873 = vmatmul.bf16.gmra.mxu0 %v2020
    %v2874 = vpop.f32.mrf.mxu0
    %v2875 = vadd.f32 %v2862, %v2874
    %v2876 = vpop.f32.mrf.mxu0
    %2877 = vdwg.mxu0
    %2878 = vmatpush.bf16.xpose.msra.mxu0 0
    %2879 = vmatpush.bf16.xpose.msra.mxu0 0
    %2880 = vmatpush.bf16.xpose.msra.mxu0 0
    %2881 = vmatpush.bf16.xpose.msra.mxu0 0
    %2882 = vmatpush.bf16.xpose.msra.mxu0 0
    %2883 = vmatpush.bf16.xpose.msra.mxu0 0
    %2884 = vmatpush.bf16.xpose.msra.mxu0 0
    %2885 = vmatpush.bf16.xpose.msra.mxu0 %v2138
    %2886 = vmatmul.bf16.gmra.mxu0 %v2021
    %v2887 = vpop.f32.mrf.mxu0
    %v2888 = vadd.f32 %v2875, %v2887
    %v2889 = vpop.f32.mrf.mxu0
    %2890 = vdwg.mxu0
    %2891 = vmatpush.bf16.xpose.msra.mxu0 0
    %2892 = vmatpush.bf16.xpose.msra.mxu0 0
    %2893 = vmatpush.bf16.xpose.msra.mxu0 0
    %2894 = vmatpush.bf16.xpose.msra.mxu0 0
    %2895 = vmatpush.bf16.xpose.msra.mxu0 0
    %2896 = vmatpush.bf16.xpose.msra.mxu0 0
    %2897 = vmatpush.bf16.xpose.msra.mxu0 0
    %2898 = vmatpush.bf16.xpose.msra.mxu0 %v2139
    %2899 = vmatmul.bf16.gmra.mxu0 %v2022
    %v2900 = vpop.f32.mrf.mxu0
    %v2901 = vadd.f32 %v2888, %v2900
    %v2902 = vpop.f32.mrf.mxu0
    %2903 = vdwg.mxu0
    %2904 = vmatpush.bf16.xpose.msra.mxu0 0
    %2905 = vmatpush.bf16.xpose.msra.mxu0 0
    %2906 = vmatpush.bf16.xpose.msra.mxu0 0
    %2907 = vmatpush.bf16.xpose.msra.mxu0 0
    %2908 = vmatpush.bf16.xpose.msra.mxu0 0
    %2909 = vmatpush.bf16.xpose.msra.mxu0 0
    %2910 = vmatpush.bf16.xpose.msra.mxu0 0
    %2911 = vmatpush.bf16.xpose.msra.mxu0 %v2140
    %2912 = vmatmul.bf16.gmra.mxu0 %v2023
    %v2913 = vpop.f32.mrf.mxu0
    %v2914 = vadd.f32 %v2901, %v2913
    %v2915 = vpop.f32.mrf.mxu0
    %2916 = vdwg.mxu0
    %2917 = vmatpush.bf16.xpose.msra.mxu0 0
    %2918 = vmatpush.bf16.xpose.msra.mxu0 0
    %2919 = vmatpush.bf16.xpose.msra.mxu0 0
    %2920 = vmatpush.bf16.xpose.msra.mxu0 0
    %2921 = vmatpush.bf16.xpose.msra.mxu0 0
    %2922 = vmatpush.bf16.xpose.msra.mxu0 0
    %2923 = vmatpush.bf16.xpose.msra.mxu0 0
    %2924 = vmatpush.bf16.xpose.msra.mxu0 %v2141
    %2925 = vmatmul.bf16.gmra.mxu0 %v2024
    %v2926 = vpop.f32.mrf.mxu0
    %v2927 = vadd.f32 %v2914, %v2926
    %v2928 = vpop.f32.mrf.mxu0
    %2929 = vdwg.mxu0
    %2930 = vmatpush.bf16.xpose.msra.mxu0 0
    %2931 = vmatpush.bf16.xpose.msra.mxu0 0
    %2932 = vmatpush.bf16.xpose.msra.mxu0 0
    %2933 = vmatpush.bf16.xpose.msra.mxu0 0
    %2934 = vmatpush.bf16.xpose.msra.mxu0 0
    %2935 = vmatpush.bf16.xpose.msra.mxu0 0
    %2936 = vmatpush.bf16.xpose.msra.mxu0 0
    %2937 = vmatpush.bf16.xpose.msra.mxu0 %v2142
    %2938 = vmatmul.bf16.gmra.mxu0 %v2025
    %v2939 = vpop.f32.mrf.mxu0
    %v2940 = vadd.f32 %v2927, %v2939
    %v2941 = vpop.f32.mrf.mxu0
    %2942 = vdwg.mxu0
    %2943 = vmatpush.bf16.xpose.msra.mxu0 0
    %2944 = vmatpush.bf16.xpose.msra.mxu0 0
    %2945 = vmatpush.bf16.xpose.msra.mxu0 0
    %2946 = vmatpush.bf16.xpose.msra.mxu0 0
    %2947 = vmatpush.bf16.xpose.msra.mxu0 0
    %2948 = vmatpush.bf16.xpose.msra.mxu0 0
    %2949 = vmatpush.bf16.xpose.msra.mxu0 0
    %2950 = vmatpush.bf16.xpose.msra.mxu0 %v2143
    %2951 = vmatmul.bf16.gmra.mxu0 %v2026
    %v2952 = vpop.f32.mrf.mxu0
    %v2953 = vadd.f32 %v2940, %v2952
    %v2954 = vpop.f32.mrf.mxu0
    %2955 = vdwg.mxu0
    %2956 = vmatpush.bf16.xpose.msra.mxu0 0
    %2957 = vmatpush.bf16.xpose.msra.mxu0 0
    %2958 = vmatpush.bf16.xpose.msra.mxu0 0
    %2959 = vmatpush.bf16.xpose.msra.mxu0 0
    %2960 = vmatpush.bf16.xpose.msra.mxu0 0
    %2961 = vmatpush.bf16.xpose.msra.mxu0 0
    %2962 = vmatpush.bf16.xpose.msra.mxu0 0
    %2963 = vmatpush.bf16.xpose.msra.mxu0 %v2148
    %2964 = vmatmul.bf16.gmra.mxu0 %v2027
    %v2965 = vpop.f32.mrf.mxu0
    %v2966 = vadd.f32 %v2953, %v2965
    %v2967 = vpop.f32.mrf.mxu0
    %2968 = vdwg.mxu0
    %2969 = vmatpush.bf16.xpose.msra.mxu0 0
    %2970 = vmatpush.bf16.xpose.msra.mxu0 0
    %2971 = vmatpush.bf16.xpose.msra.mxu0 0
    %2972 = vmatpush.bf16.xpose.msra.mxu0 0
    %2973 = vmatpush.bf16.xpose.msra.mxu0 0
    %2974 = vmatpush.bf16.xpose.msra.mxu0 0
    %2975 = vmatpush.bf16.xpose.msra.mxu0 0
    %2976 = vmatpush.bf16.xpose.msra.mxu0 %v2149
    %2977 = vmatmul.bf16.gmra.mxu0 %v2028
    %v2978 = vpop.f32.mrf.mxu0
    %v2979 = vadd.f32 %v2966, %v2978
    %v2980 = vpop.f32.mrf.mxu0
    %2981 = vdwg.mxu0
    %2982 = vmatpush.bf16.xpose.msra.mxu0 0
    %2983 = vmatpush.bf16.xpose.msra.mxu0 0
    %2984 = vmatpush.bf16.xpose.msra.mxu0 0
    %2985 = vmatpush.bf16.xpose.msra.mxu0 0
    %2986 = vmatpush.bf16.xpose.msra.mxu0 0
    %2987 = vmatpush.bf16.xpose.msra.mxu0 0
    %2988 = vmatpush.bf16.xpose.msra.mxu0 0
    %2989 = vmatpush.bf16.xpose.msra.mxu0 %v2150
    %2990 = vmatmul.bf16.gmra.mxu0 %v2029
    %v2991 = vpop.f32.mrf.mxu0
    %v2992 = vadd.f32 %v2979, %v2991
    %v2993 = vpop.f32.mrf.mxu0
    %2994 = vdwg.mxu0
    %2995 = vmatpush.bf16.xpose.msra.mxu0 0
    %2996 = vmatpush.bf16.xpose.msra.mxu0 0
    %2997 = vmatpush.bf16.xpose.msra.mxu0 0
    %2998 = vmatpush.bf16.xpose.msra.mxu0 0
    %2999 = vmatpush.bf16.xpose.msra.mxu0 0
    %3000 = vmatpush.bf16.xpose.msra.mxu0 0
    %3001 = vmatpush.bf16.xpose.msra.mxu0 0
    %3002 = vmatpush.bf16.xpose.msra.mxu0 %v2151
    %3003 = vmatmul.bf16.gmra.mxu0 %v2030
    %v3004 = vpop.f32.mrf.mxu0
    %v3005 = vadd.f32 %v2992, %v3004
    %v3006 = vpop.f32.mrf.mxu0
    %3007 = vdwg.mxu0
    %3008 = vmatpush.bf16.xpose.msra.mxu0 0
    %3009 = vmatpush.bf16.xpose.msra.mxu0 0
    %3010 = vmatpush.bf16.xpose.msra.mxu0 0
    %3011 = vmatpush.bf16.xpose.msra.mxu0 0
    %3012 = vmatpush.bf16.xpose.msra.mxu0 0
    %3013 = vmatpush.bf16.xpose.msra.mxu0 0
    %3014 = vmatpush.bf16.xpose.msra.mxu0 0
    %3015 = vmatpush.bf16.xpose.msra.mxu0 %v2152
    %3016 = vmatmul.bf16.gmra.mxu0 %v2031
    %v3017 = vpop.f32.mrf.mxu0
    %v3018 = vadd.f32 %v3005, %v3017
    %v3019 = vpop.f32.mrf.mxu0
    %3020 = vdwg.mxu0
    %3021 = vmatpush.bf16.xpose.msra.mxu0 0
    %3022 = vmatpush.bf16.xpose.msra.mxu0 0
    %3023 = vmatpush.bf16.xpose.msra.mxu0 0
    %3024 = vmatpush.bf16.xpose.msra.mxu0 0
    %3025 = vmatpush.bf16.xpose.msra.mxu0 0
    %3026 = vmatpush.bf16.xpose.msra.mxu0 0
    %3027 = vmatpush.bf16.xpose.msra.mxu0 0
    %3028 = vmatpush.bf16.xpose.msra.mxu0 %v2153
    %3029 = vmatmul.bf16.gmra.mxu0 %v2032
    %v3030 = vpop.f32.mrf.mxu0
    %v3031 = vadd.f32 %v3018, %v3030
    %v3032 = vpop.f32.mrf.mxu0
    %3033 = vdwg.mxu0
    %3034 = vmatpush.bf16.xpose.msra.mxu0 0
    %3035 = vmatpush.bf16.xpose.msra.mxu0 0
    %3036 = vmatpush.bf16.xpose.msra.mxu0 0
    %3037 = vmatpush.bf16.xpose.msra.mxu0 0
    %3038 = vmatpush.bf16.xpose.msra.mxu0 0
    %3039 = vmatpush.bf16.xpose.msra.mxu0 0
    %3040 = vmatpush.bf16.xpose.msra.mxu0 0
    %3041 = vmatpush.bf16.xpose.msra.mxu0 %v2154
    %3042 = vmatmul.bf16.gmra.mxu0 %v2033
    %v3043 = vpop.f32.mrf.mxu0
    %v3044 = vadd.f32 %v3031, %v3043
    %v3045 = vpop.f32.mrf.mxu0
    %3046 = vdwg.mxu0
    %3047 = vmatpush.bf16.xpose.msra.mxu0 0
    %3048 = vmatpush.bf16.xpose.msra.mxu0 0
    %3049 = vmatpush.bf16.xpose.msra.mxu0 0
    %3050 = vmatpush.bf16.xpose.msra.mxu0 0
    %3051 = vmatpush.bf16.xpose.msra.mxu0 0
    %3052 = vmatpush.bf16.xpose.msra.mxu0 0
    %3053 = vmatpush.bf16.xpose.msra.mxu0 0
    %3054 = vmatpush.bf16.xpose.msra.mxu0 %v2155
    %3055 = vmatmul.bf16.gmra.mxu0 %v2034
    %v3056 = vpop.f32.mrf.mxu0
    %v3057 = vadd.f32 %v3044, %v3056
    %v3058 = vpop.f32.mrf.mxu0
    %3059 = vdwg.mxu0
    %3060 = vmatpush.bf16.xpose.msra.mxu0 0
    %3061 = vmatpush.bf16.xpose.msra.mxu0 0
    %3062 = vmatpush.bf16.xpose.msra.mxu0 0
    %3063 = vmatpush.bf16.xpose.msra.mxu0 0
    %3064 = vmatpush.bf16.xpose.msra.mxu0 0
    %3065 = vmatpush.bf16.xpose.msra.mxu0 0
    %3066 = vmatpush.bf16.xpose.msra.mxu0 0
    %3067 = vmatpush.bf16.xpose.msra.mxu0 %v2158
    %3068 = vmatmul.bf16.gmra.mxu0 %v2035
    %v3069 = vpop.f32.mrf.mxu0
    %v3070 = vadd.f32 %v3057, %v3069
    %v3071 = vpop.f32.mrf.mxu0
    %3072 = vdwg.mxu0
    %3073 = vmatpush.bf16.xpose.msra.mxu0 0
    %3074 = vmatpush.bf16.xpose.msra.mxu0 0
    %3075 = vmatpush.bf16.xpose.msra.mxu0 0
    %3076 = vmatpush.bf16.xpose.msra.mxu0 0
    %3077 = vmatpush.bf16.xpose.msra.mxu0 0
    %3078 = vmatpush.bf16.xpose.msra.mxu0 0
    %3079 = vmatpush.bf16.xpose.msra.mxu0 0
    %3080 = vmatpush.bf16.xpose.msra.mxu0 %v2159
    %3081 = vmatmul.bf16.gmra.mxu0 %v2036
    %v3082 = vpop.f32.mrf.mxu0
    %v3083 = vadd.f32 %v3070, %v3082
    %v3084 = vpop.f32.mrf.mxu0
    %3085 = vdwg.mxu0
    %3086 = vmatpush.bf16.xpose.msra.mxu0 0
    %3087 = vmatpush.bf16.xpose.msra.mxu0 0
    %3088 = vmatpush.bf16.xpose.msra.mxu0 0
    %3089 = vmatpush.bf16.xpose.msra.mxu0 0
    %3090 = vmatpush.bf16.xpose.msra.mxu0 0
    %3091 = vmatpush.bf16.xpose.msra.mxu0 0
    %3092 = vmatpush.bf16.xpose.msra.mxu0 0
    %3093 = vmatpush.bf16.xpose.msra.mxu0 %v2160
    %3094 = vmatmul.bf16.gmra.mxu0 %v2037
    %v3095 = vpop.f32.mrf.mxu0
    %v3096 = vadd.f32 %v3083, %v3095
    %v3097 = vpop.f32.mrf.mxu0
    %3098 = vdwg.mxu0
    %vm3099 = vcmask 25600
    %3100 = vst.msk [vmem:[#allocation7] sm:$0x3] %vm3099, %v3096
    // Predicated region
    $region30: #{jstnet_forward.1} parent=1 // pred_check
      _
    $region31: #{jstnet_forward.1} parent=1 // pred_check_branch
      %3102 = sbr.rel (0) target = $region33
    $region32: #{jstnet_forward.1} parent=1 // pred_region
      %3104 = vsyncadd [#allocation4], 0
      %s3106 = sshll.u32 [#allocation7], 4
      %s3107 = int_to_ptr.vmem [resolvable:$true] %s3106
      %s3108 = sshll.u32 %s5, 4
      %s3109 = int_to_ptr.hbm [resolvable:$true] %s3108
      %3111 = dma.vmem_to_hbm [thread:$0]  %s3107, 32, %s3109, [#allocation4]
    $region33: #{jstnet_forward.1} parent=1 // pred_fallthru
      _
    // Predicated region
    $region34: #{jstnet_forward.1} parent=1 // pred_check
      _
    $region35: #{jstnet_forward.1} parent=1 // pred_check_branch
      %3113 = sbr.rel (0) target = $region37
    $region36: #{jstnet_forward.1} parent=1 // pred_region
      %3115 = dma.done [#allocation4], 32
    $region37: #{jstnet_forward.1} parent=1 // pred_fallthru
      _
    %3116 = vsyncpa [#allocation3], 1
    %3117 = vsyncpa [#allocation6], 1
    %3118 = vsyncpa [#allocation4], 1

</llo_original>
